<compile_context>
chip_gen: v7x
topology: tpu7x:2x2x1
jax: 0.10.0
libtpu: 0.0.40
codegen_flags: <defaults>
</compile_context>

<pallas_src>
import jax
import jax.numpy as jnp
from jax.experimental import pallas as pl
from jax.experimental.pallas import tpu as pltpu

_R = 2  # shuffle factor = up_ratio // 2 (module only consistent for up_ratio == 4)


def _seps_kernel(x_ref, w0_ref, b0_ref, w1_ref, b1_ref, w2_ref, b2_ref,
                 w3_ref, b3_ref, out_ref):
    # x_ref : (Cin, TQ)        input tile (spatial = flattened D*N)
    # w0    : (Co, Cin), b0: (Co, 1)
    # w1/2/3: (2Co, Co) with ROWS pre-permuted (0::2 then 1::2), b*: (2Co, 1)
    # out   : (8, Co, TQ)      branch-major output tile (8 = r^3 shuffle branches)
    co = w0_ref.shape[0]

    x = x_ref[...]                                                       # (Cin, TQ)
    h0 = jnp.dot(w0_ref[...], x, preferred_element_type=jnp.float32) + b0_ref[...]
    h0 = jnp.maximum(h0, 0.0)                                            # conv0 + ReLU
    h1 = jnp.dot(w1_ref[...], h0, preferred_element_type=jnp.float32) + b1_ref[...]

    w2 = w2_ref[...]
    b2 = b2_ref[...]
    w3 = w3_ref[...]
    b3 = b3_ref[...]

    # Shuffle branches: row-block c-slices of the (row-permuted) conv outputs.
    for j1 in range(_R):
        s1 = h1[j1 * co:(j1 + 1) * co, :]                                # (Co, TQ)
        h2 = jnp.dot(w2, s1, preferred_element_type=jnp.float32) + b2    # (2Co, TQ)
        for j2 in range(_R):
            s2 = h2[j2 * co:(j2 + 1) * co, :]                            # (Co, TQ)
            h3 = jnp.dot(w3, s2, preferred_element_type=jnp.float32) + b3
            for j3 in range(_R):
                m = (j1 * _R + j2) * _R + j3                             # final offset
                out_ref[m, :, :] = h3[j3 * co:(j3 + 1) * co, :]


def _permute_rows(w, b):
    """Reorder output channels so shuffle branches are contiguous row blocks."""
    wp = jnp.concatenate([w[j::_R] for j in range(_R)], axis=0)
    bp = jnp.concatenate([b[j::_R] for j in range(_R)], axis=0)
    return wp, bp[:, None]


def seps_forward(x, params, *, tq=None):
    """x: (B, Cin, D, N) f32; params = (W0,b0,W1,b1,W2,b2,W3,b3) as in the PyTorch
    module (W0: (Co,Cin), W1/2/3: (2Co,Co), b0: (Co,), b1/2/3: (2Co,)).
    Returns (B, Co, D, 8*N) f32."""
    W0, b0, W1, b1, W2, b2, W3, b3 = params
    B, Cin, D, N = x.shape
    Co = W0.shape[0]
    S = D * N
    r3 = _R ** 3

    if tq is None:
        for cand in (512, 256, 128):
            if S % cand == 0:
                tq = cand
                break
        else:
            tq = S                     # single spatial tile fallback

    xs = x.reshape(B, Cin, S).astype(jnp.float32)
    w1p, b1p = _permute_rows(W1, b1)
    w2p, b2p = _permute_rows(W2, b2)
    w3p, b3p = _permute_rows(W3, b3)
    b0c = b0[:, None]

    out = pl.pallas_call(
        _seps_kernel,
        out_shape=jax.ShapeDtypeStruct((B, r3, Co, S), jnp.float32),
        grid_spec=pltpu.PrefetchScalarGridSpec(
            num_scalar_prefetch=0,
            grid=(B, S // tq),
            in_specs=[
                pl.BlockSpec((None, Cin, tq), lambda b, s: (b, 0, s)),   # x tile
                pl.BlockSpec((Co, Cin), lambda b, s: (0, 0)),            # W0
                pl.BlockSpec((Co, 1), lambda b, s: (0, 0)),              # b0
                pl.BlockSpec((2 * Co, Co), lambda b, s: (0, 0)),         # W1 (perm)
                pl.BlockSpec((2 * Co, 1), lambda b, s: (0, 0)),          # b1 (perm)
                pl.BlockSpec((2 * Co, Co), lambda b, s: (0, 0)),         # W2 (perm)
                pl.BlockSpec((2 * Co, 1), lambda b, s: (0, 0)),          # b2 (perm)
                pl.BlockSpec((2 * Co, Co), lambda b, s: (0, 0)),         # W3 (perm)
                pl.BlockSpec((2 * Co, 1), lambda b, s: (0, 0)),          # b3 (perm)
            ],
            out_specs=pl.BlockSpec((None, r3, Co, tq), lambda b, s: (b, 0, 0, s)),
        ),
        compiler_params=pltpu.CompilerParams(
            dimension_semantics=("parallel", "parallel"),
            vmem_limit_bytes=48 * 1024 * 1024,
        ),
    )(xs, W0, b0c, w1p, b1p, w2p, b2p, w3p, b3p)

    # (B, 8, Co, S): entry [b, m, c, s] belongs at final spatial index 8*s + m.
    out = jnp.transpose(out, (0, 2, 3, 1)).reshape(B, Co, S * r3)
    return out.reshape(B, Co, D, r3 * N)


# ----------------------------- pure-JAX reference ------------------------------
def _conv1x1_ref(x, w, b):
    return jnp.einsum('oi,bidn->bodn', w, x) + b[None, :, None, None]


def _shuffle_ref(x, r):
    B, RC, D, N = x.shape
    C = RC // r
    x = x.reshape(B, C, r, D, N)
    x = jnp.transpose(x, (0, 1, 3, 4, 2))            # (B, C, D, N, r)
    return x.reshape(B, C, D, N * r)


def seps_reference(x, params):
    W0, b0, W1, b1, W2, b2, W3, b3 = params
    h = jax.nn.relu(_conv1x1_ref(x, W0, b0))
    h = _shuffle_ref(_conv1x1_ref(h, W1, b1), _R)
    h = _shuffle_ref(_conv1x1_ref(h, W2, b2), _R)
    h = _shuffle_ref(_conv1x1_ref(h, W3, b3), _R)
    return h


def _make_params(key, cin, co):
    ks = jax.random.split(key, 8)
    W0 = jax.random.normal(ks[0], (co, cin), jnp.float32) / (cin ** 0.5)
    b0 = 0.1 * jax.random.normal(ks[1], (co,), jnp.float32)
    W1 = jax.random.normal(ks[2], (2 * co, co), jnp.float32) / (co ** 0.5)
    b1 = 0.1 * jax.random.normal(ks[3], (2 * co,), jnp.float32)
    W2 = jax.random.normal(ks[4], (2 * co, co), jnp.float32) / (co ** 0.5)
    b2 = 0.1 * jax.random.normal(ks[5], (2 * co,), jnp.float32)
    W3 = jax.random.normal(ks[6], (2 * co, co), jnp.float32) / (co ** 0.5)
    b3 = 0.1 * jax.random.normal(ks[7], (2 * co,), jnp.float32)
    return (W0, b0, W1, b1, W2, b2, W3, b3)


if __name__ == "__main__":
    key = jax.random.PRNGKey(0)
    kp, kx1, kx2 = jax.random.split(key, 3)

    Cin, Co = 16, 32
    params = _make_params(kp, Cin, Co)

    # Case 1: typical point-cloud layout (D == 1).
    B, D, N = 2, 1, 256
    x = jax.random.normal(kx1, (B, Cin, D, N), jnp.float32)
    out = seps_forward(x, params)
    jax.block_until_ready(out)
    ref = seps_reference(x, params)
    assert out.shape == (B, Co, D, 8 * N) and out.dtype == jnp.float32
    assert bool(jnp.allclose(out, ref, rtol=2e-3, atol=2e-3)), "mismatch (D=1 case)"

    # Case 2: D > 1 (generic 4-D input, shuffle only expands the last axis N).
    B2, D2, N2 = 1, 2, 128
    x2 = jax.random.normal(kx2, (B2, Cin, D2, N2), jnp.float32)
    out2 = seps_forward(x2, params)
    jax.block_until_ready(out2)
    ref2 = seps_reference(x2, params)
    assert out2.shape == (B2, Co, D2, 8 * N2)
    assert bool(jnp.allclose(out2, ref2, rtol=2e-3, atol=2e-3)), "mismatch (D=2 case)"

    print("KERNEL_OK")
</pallas_src>

<mosaic_0001>
module attributes {stable_mosaic.version = 11 : i64} {
  func.func @_seps_kernel(%arg0: i32, %arg1: i32, %arg2: memref<1x16x256xf32, #tpu.memory_space<vmem>>, %arg3: memref<32x16xf32, #tpu.memory_space<vmem>>, %arg4: memref<32x1xf32, #tpu.memory_space<vmem>>, %arg5: memref<64x32xf32, #tpu.memory_space<vmem>>, %arg6: memref<64x1xf32, #tpu.memory_space<vmem>>, %arg7: memref<64x32xf32, #tpu.memory_space<vmem>>, %arg8: memref<64x1xf32, #tpu.memory_space<vmem>>, %arg9: memref<64x32xf32, #tpu.memory_space<vmem>>, %arg10: memref<64x1xf32, #tpu.memory_space<vmem>>, %arg11: memref<1x8x32x256xf32, #tpu.memory_space<vmem>>) attributes {dimension_semantics = [#tpu.dimension_semantics<parallel>, #tpu.dimension_semantics<parallel>], iteration_bounds = array<i64: 2, 1>, scalar_prefetch = 0 : i64, scratch_operands = 0 : i64, tpu.core_type = #tpu.core_type<tc>, window_params = [{transform_indices = @transform_0, window_bounds = array<i64: 1, 16, 256>}, {pipeline_mode = #tpu.pipeline_mode<synchronous>, transform_indices = @transform_1, window_bounds = array<i64: 32, 16>}, {pipeline_mode = #tpu.pipeline_mode<synchronous>, transform_indices = @transform_2, window_bounds = array<i64: 32, 1>}, {pipeline_mode = #tpu.pipeline_mode<synchronous>, transform_indices = @transform_3, window_bounds = array<i64: 64, 32>}, {pipeline_mode = #tpu.pipeline_mode<synchronous>, transform_indices = @transform_4, window_bounds = array<i64: 64, 1>}, {pipeline_mode = #tpu.pipeline_mode<synchronous>, transform_indices = @transform_5, window_bounds = array<i64: 64, 32>}, {pipeline_mode = #tpu.pipeline_mode<synchronous>, transform_indices = @transform_6, window_bounds = array<i64: 64, 1>}, {pipeline_mode = #tpu.pipeline_mode<synchronous>, transform_indices = @transform_7, window_bounds = array<i64: 64, 32>}, {pipeline_mode = #tpu.pipeline_mode<synchronous>, transform_indices = @transform_8, window_bounds = array<i64: 64, 1>}, {transform_indices = @transform_9, window_bounds = array<i64: 1, 8, 32, 256>}]} {
    %c0 = arith.constant 0 : index
    %c0_0 = arith.constant 0 : index
    %c0_1 = arith.constant 0 : index
    %0 = vector.load %arg2[%c0, %c0_0, %c0_1] : memref<1x16x256xf32, #tpu.memory_space<vmem>>, vector<1x16x256xf32>
    %1 = vector.shape_cast %0 : vector<1x16x256xf32> to vector<16x256xf32>
    %c0_2 = arith.constant 0 : index
    %c0_3 = arith.constant 0 : index
    %2 = vector.load %arg3[%c0_2, %c0_3] : memref<32x16xf32, #tpu.memory_space<vmem>>, vector<32x16xf32>
    %cst = arith.constant dense<0.000000e+00> : vector<32x256xf32>
    %3 = tpu.matmul %2, %1, %cst {dimension_numbers = #tpu.dot_dimension_numbers<[1], [0], [0], [1], [0, 0, 1, 1], [], []>} : vector<32x16xf32>, vector<16x256xf32>, vector<32x256xf32> -> vector<32x256xf32>
    %c0_4 = arith.constant 0 : index
    %c0_5 = arith.constant 0 : index
    %4 = vector.load %arg4[%c0_4, %c0_5] : memref<32x1xf32, #tpu.memory_space<vmem>>, vector<32x1xf32>
    %5 = vector.broadcast %4 : vector<32x1xf32> to vector<32x256xf32>
    %6 = arith.addf %3, %5 : vector<32x256xf32>
    %cst_6 = arith.constant 0.000000e+00 : f32
    %7 = vector.broadcast %cst_6 : f32 to vector<32x256xf32>
    %8 = arith.maximumf %6, %7 : vector<32x256xf32>
    %c0_7 = arith.constant 0 : index
    %c0_8 = arith.constant 0 : index
    %9 = vector.load %arg5[%c0_7, %c0_8] : memref<64x32xf32, #tpu.memory_space<vmem>>, vector<64x32xf32>
    %cst_9 = arith.constant dense<0.000000e+00> : vector<64x256xf32>
    %10 = tpu.matmul %9, %8, %cst_9 {dimension_numbers = #tpu.dot_dimension_numbers<[1], [0], [0], [1], [0, 0, 1, 1], [], []>} : vector<64x32xf32>, vector<32x256xf32>, vector<64x256xf32> -> vector<64x256xf32>
    %c0_10 = arith.constant 0 : index
    %c0_11 = arith.constant 0 : index
    %11 = vector.load %arg6[%c0_10, %c0_11] : memref<64x1xf32, #tpu.memory_space<vmem>>, vector<64x1xf32>
    %12 = vector.broadcast %11 : vector<64x1xf32> to vector<64x256xf32>
    %13 = arith.addf %10, %12 : vector<64x256xf32>
    %c0_12 = arith.constant 0 : index
    %c0_13 = arith.constant 0 : index
    %14 = vector.load %arg7[%c0_12, %c0_13] : memref<64x32xf32, #tpu.memory_space<vmem>>, vector<64x32xf32>
    %c0_14 = arith.constant 0 : index
    %c0_15 = arith.constant 0 : index
    %15 = vector.load %arg8[%c0_14, %c0_15] : memref<64x1xf32, #tpu.memory_space<vmem>>, vector<64x1xf32>
    %c0_16 = arith.constant 0 : index
    %c0_17 = arith.constant 0 : index
    %16 = vector.load %arg9[%c0_16, %c0_17] : memref<64x32xf32, #tpu.memory_space<vmem>>, vector<64x32xf32>
    %c0_18 = arith.constant 0 : index
    %c0_19 = arith.constant 0 : index
    %17 = vector.load %arg10[%c0_18, %c0_19] : memref<64x1xf32, #tpu.memory_space<vmem>>, vector<64x1xf32>
    %18 = vector.extract_strided_slice %13 {offsets = [0, 0], sizes = [32, 256], strides = [1, 1]} : vector<64x256xf32> to vector<32x256xf32>
    %cst_20 = arith.constant dense<0.000000e+00> : vector<64x256xf32>
    %19 = tpu.matmul %14, %18, %cst_20 {dimension_numbers = #tpu.dot_dimension_numbers<[1], [0], [0], [1], [0, 0, 1, 1], [], []>} : vector<64x32xf32>, vector<32x256xf32>, vector<64x256xf32> -> vector<64x256xf32>
    %20 = vector.broadcast %15 : vector<64x1xf32> to vector<64x256xf32>
    %21 = arith.addf %19, %20 : vector<64x256xf32>
    %22 = vector.extract_strided_slice %21 {offsets = [0, 0], sizes = [32, 256], strides = [1, 1]} : vector<64x256xf32> to vector<32x256xf32>
    %cst_21 = arith.constant dense<0.000000e+00> : vector<64x256xf32>
    %23 = tpu.matmul %16, %22, %cst_21 {dimension_numbers = #tpu.dot_dimension_numbers<[1], [0], [0], [1], [0, 0, 1, 1], [], []>} : vector<64x32xf32>, vector<32x256xf32>, vector<64x256xf32> -> vector<64x256xf32>
    %24 = vector.broadcast %17 : vector<64x1xf32> to vector<64x256xf32>
    %25 = arith.addf %23, %24 : vector<64x256xf32>
    %26 = vector.extract_strided_slice %25 {offsets = [0, 0], sizes = [32, 256], strides = [1, 1]} : vector<64x256xf32> to vector<32x256xf32>
    %c0_22 = arith.constant 0 : index
    %c0_23 = arith.constant 0 : index
    %c0_24 = arith.constant 0 : index
    %c0_25 = arith.constant 0 : index
    %27 = vector.load %arg11[%c0_22, %c0_23, %c0_24, %c0_25] : memref<1x8x32x256xf32, #tpu.memory_space<vmem>>, vector<1x1x32x256xf32>
    %28 = vector.shape_cast %27 : vector<1x1x32x256xf32> to vector<32x256xf32>
    %29 = vector.shape_cast %26 : vector<32x256xf32> to vector<1x1x32x256xf32>
    tpu.vector_store %arg11[%c0_22, %c0_23, %c0_24, %c0_25], %29 {strides = array<i32>} : memref<1x8x32x256xf32, #tpu.memory_space<vmem>>, vector<1x1x32x256xf32>,
    %30 = vector.extract_strided_slice %25 {offsets = [32, 0], sizes = [32, 256], strides = [1, 1]} : vector<64x256xf32> to vector<32x256xf32>
    %c0_26 = arith.constant 0 : index
    %c1 = arith.constant 1 : index
    %c0_27 = arith.constant 0 : index
    %c0_28 = arith.constant 0 : index
    %31 = vector.load %arg11[%c0_26, %c1, %c0_27, %c0_28] : memref<1x8x32x256xf32, #tpu.memory_space<vmem>>, vector<1x1x32x256xf32>
    %32 = vector.shape_cast %31 : vector<1x1x32x256xf32> to vector<32x256xf32>
    %33 = vector.shape_cast %30 : vector<32x256xf32> to vector<1x1x32x256xf32>
    tpu.vector_store %arg11[%c0_26, %c1, %c0_27, %c0_28], %33 {strides = array<i32>} : memref<1x8x32x256xf32, #tpu.memory_space<vmem>>, vector<1x1x32x256xf32>,
    %34 = vector.extract_strided_slice %21 {offsets = [32, 0], sizes = [32, 256], strides = [1, 1]} : vector<64x256xf32> to vector<32x256xf32>
    %cst_29 = arith.constant dense<0.000000e+00> : vector<64x256xf32>
    %35 = tpu.matmul %16, %34, %cst_29 {dimension_numbers = #tpu.dot_dimension_numbers<[1], [0], [0], [1], [0, 0, 1, 1], [], []>} : vector<64x32xf32>, vector<32x256xf32>, vector<64x256xf32> -> vector<64x256xf32>
    %36 = vector.broadcast %17 : vector<64x1xf32> to vector<64x256xf32>
    %37 = arith.addf %35, %36 : vector<64x256xf32>
    %38 = vector.extract_strided_slice %37 {offsets = [0, 0], sizes = [32, 256], strides = [1, 1]} : vector<64x256xf32> to vector<32x256xf32>
    %c0_30 = arith.constant 0 : index
    %c2 = arith.constant 2 : index
    %c0_31 = arith.constant 0 : index
    %c0_32 = arith.constant 0 : index
    %39 = vector.load %arg11[%c0_30, %c2, %c0_31, %c0_32] : memref<1x8x32x256xf32, #tpu.memory_space<vmem>>, vector<1x1x32x256xf32>
    %40 = vector.shape_cast %39 : vector<1x1x32x256xf32> to vector<32x256xf32>
    %41 = vector.shape_cast %38 : vector<32x256xf32> to vector<1x1x32x256xf32>
    tpu.vector_store %arg11[%c0_30, %c2, %c0_31, %c0_32], %41 {strides = array<i32>} : memref<1x8x32x256xf32, #tpu.memory_space<vmem>>, vector<1x1x32x256xf32>,
    %42 = vector.extract_strided_slice %37 {offsets = [32, 0], sizes = [32, 256], strides = [1, 1]} : vector<64x256xf32> to vector<32x256xf32>
    %c0_33 = arith.constant 0 : index
    %c3 = arith.constant 3 : index
    %c0_34 = arith.constant 0 : index
    %c0_35 = arith.constant 0 : index
    %43 = vector.load %arg11[%c0_33, %c3, %c0_34, %c0_35] : memref<1x8x32x256xf32, #tpu.memory_space<vmem>>, vector<1x1x32x256xf32>
    %44 = vector.shape_cast %43 : vector<1x1x32x256xf32> to vector<32x256xf32>
    %45 = vector.shape_cast %42 : vector<32x256xf32> to vector<1x1x32x256xf32>
    tpu.vector_store %arg11[%c0_33, %c3, %c0_34, %c0_35], %45 {strides = array<i32>} : memref<1x8x32x256xf32, #tpu.memory_space<vmem>>, vector<1x1x32x256xf32>,
    %46 = vector.extract_strided_slice %13 {offsets = [32, 0], sizes = [32, 256], strides = [1, 1]} : vector<64x256xf32> to vector<32x256xf32>
    %cst_36 = arith.constant dense<0.000000e+00> : vector<64x256xf32>
    %47 = tpu.matmul %14, %46, %cst_36 {dimension_numbers = #tpu.dot_dimension_numbers<[1], [0], [0], [1], [0, 0, 1, 1], [], []>} : vector<64x32xf32>, vector<32x256xf32>, vector<64x256xf32> -> vector<64x256xf32>
    %48 = vector.broadcast %15 : vector<64x1xf32> to vector<64x256xf32>
    %49 = arith.addf %47, %48 : vector<64x256xf32>
    %50 = vector.extract_strided_slice %49 {offsets = [0, 0], sizes = [32, 256], strides = [1, 1]} : vector<64x256xf32> to vector<32x256xf32>
    %cst_37 = arith.constant dense<0.000000e+00> : vector<64x256xf32>
    %51 = tpu.matmul %16, %50, %cst_37 {dimension_numbers = #tpu.dot_dimension_numbers<[1], [0], [0], [1], [0, 0, 1, 1], [], []>} : vector<64x32xf32>, vector<32x256xf32>, vector<64x256xf32> -> vector<64x256xf32>
    %52 = vector.broadcast %17 : vector<64x1xf32> to vector<64x256xf32>
    %53 = arith.addf %51, %52 : vector<64x256xf32>
    %54 = vector.extract_strided_slice %53 {offsets = [0, 0], sizes = [32, 256], strides = [1, 1]} : vector<64x256xf32> to vector<32x256xf32>
    %c0_38 = arith.constant 0 : index
    %c4 = arith.constant 4 : index
    %c0_39 = arith.constant 0 : index
    %c0_40 = arith.constant 0 : index
    %55 = vector.load %arg11[%c0_38, %c4, %c0_39, %c0_40] : memref<1x8x32x256xf32, #tpu.memory_space<vmem>>, vector<1x1x32x256xf32>
    %56 = vector.shape_cast %55 : vector<1x1x32x256xf32> to vector<32x256xf32>
    %57 = vector.shape_cast %54 : vector<32x256xf32> to vector<1x1x32x256xf32>
    tpu.vector_store %arg11[%c0_38, %c4, %c0_39, %c0_40], %57 {strides = array<i32>} : memref<1x8x32x256xf32, #tpu.memory_space<vmem>>, vector<1x1x32x256xf32>,
    %58 = vector.extract_strided_slice %53 {offsets = [32, 0], sizes = [32, 256], strides = [1, 1]} : vector<64x256xf32> to vector<32x256xf32>
    %c0_41 = arith.constant 0 : index
    %c5 = arith.constant 5 : index
    %c0_42 = arith.constant 0 : index
    %c0_43 = arith.constant 0 : index
    %59 = vector.load %arg11[%c0_41, %c5, %c0_42, %c0_43] : memref<1x8x32x256xf32, #tpu.memory_space<vmem>>, vector<1x1x32x256xf32>
    %60 = vector.shape_cast %59 : vector<1x1x32x256xf32> to vector<32x256xf32>
    %61 = vector.shape_cast %58 : vector<32x256xf32> to vector<1x1x32x256xf32>
    tpu.vector_store %arg11[%c0_41, %c5, %c0_42, %c0_43], %61 {strides = array<i32>} : memref<1x8x32x256xf32, #tpu.memory_space<vmem>>, vector<1x1x32x256xf32>,
    %62 = vector.extract_strided_slice %49 {offsets = [32, 0], sizes = [32, 256], strides = [1, 1]} : vector<64x256xf32> to vector<32x256xf32>
    %cst_44 = arith.constant dense<0.000000e+00> : vector<64x256xf32>
    %63 = tpu.matmul %16, %62, %cst_44 {dimension_numbers = #tpu.dot_dimension_numbers<[1], [0], [0], [1], [0, 0, 1, 1], [], []>} : vector<64x32xf32>, vector<32x256xf32>, vector<64x256xf32> -> vector<64x256xf32>
    %64 = vector.broadcast %17 : vector<64x1xf32> to vector<64x256xf32>
    %65 = arith.addf %63, %64 : vector<64x256xf32>
    %66 = vector.extract_strided_slice %65 {offsets = [0, 0], sizes = [32, 256], strides = [1, 1]} : vector<64x256xf32> to vector<32x256xf32>
    %c0_45 = arith.constant 0 : index
    %c6 = arith.constant 6 : index
    %c0_46 = arith.constant 0 : index
    %c0_47 = arith.constant 0 : index
    %67 = vector.load %arg11[%c0_45, %c6, %c0_46, %c0_47] : memref<1x8x32x256xf32, #tpu.memory_space<vmem>>, vector<1x1x32x256xf32>
    %68 = vector.shape_cast %67 : vector<1x1x32x256xf32> to vector<32x256xf32>
    %69 = vector.shape_cast %66 : vector<32x256xf32> to vector<1x1x32x256xf32>
    tpu.vector_store %arg11[%c0_45, %c6, %c0_46, %c0_47], %69 {strides = array<i32>} : memref<1x8x32x256xf32, #tpu.memory_space<vmem>>, vector<1x1x32x256xf32>,
    %70 = vector.extract_strided_slice %65 {offsets = [32, 0], sizes = [32, 256], strides = [1, 1]} : vector<64x256xf32> to vector<32x256xf32>
    %c0_48 = arith.constant 0 : index
    %c7 = arith.constant 7 : index
    %c0_49 = arith.constant 0 : index
    %c0_50 = arith.constant 0 : index
    %71 = vector.load %arg11[%c0_48, %c7, %c0_49, %c0_50] : memref<1x8x32x256xf32, #tpu.memory_space<vmem>>, vector<1x1x32x256xf32>
    %72 = vector.shape_cast %71 : vector<1x1x32x256xf32> to vector<32x256xf32>
    %73 = vector.shape_cast %70 : vector<32x256xf32> to vector<1x1x32x256xf32>
    tpu.vector_store %arg11[%c0_48, %c7, %c0_49, %c0_50], %73 {strides = array<i32>} : memref<1x8x32x256xf32, #tpu.memory_space<vmem>>, vector<1x1x32x256xf32>,
    return
  }
  func.func @transform_0(%arg0: i32, %arg1: i32) -> (i32, i32, i32) {
    %c0_i32 = arith.constant 0 : i32
    %c0_i32_0 = arith.constant 0 : i32
    return %arg0, %c0_i32, %arg1 : i32, i32, i32
  }
  func.func @transform_1(%arg0: i32, %arg1: i32) -> (i32, i32) {
    %c0_i32 = arith.constant 0 : i32
    %c0_i32_0 = arith.constant 0 : i32
    %c0_i32_1 = arith.constant 0 : i32
    return %c0_i32, %c0_i32_0 : i32, i32
  }
  func.func @transform_2(%arg0: i32, %arg1: i32) -> (i32, i32) {
    %c0_i32 = arith.constant 0 : i32
    %c0_i32_0 = arith.constant 0 : i32
    %c0_i32_1 = arith.constant 0 : i32
    return %c0_i32, %c0_i32_0 : i32, i32
  }
  func.func @transform_3(%arg0: i32, %arg1: i32) -> (i32, i32) {
    %c0_i32 = arith.constant 0 : i32
    %c0_i32_0 = arith.constant 0 : i32
    %c0_i32_1 = arith.constant 0 : i32
    return %c0_i32, %c0_i32_0 : i32, i32
  }
  func.func @transform_4(%arg0: i32, %arg1: i32) -> (i32, i32) {
    %c0_i32 = arith.constant 0 : i32
    %c0_i32_0 = arith.constant 0 : i32
    %c0_i32_1 = arith.constant 0 : i32
    return %c0_i32, %c0_i32_0 : i32, i32
  }
  func.func @transform_5(%arg0: i32, %arg1: i32) -> (i32, i32) {
    %c0_i32 = arith.constant 0 : i32
    %c0_i32_0 = arith.constant 0 : i32
    %c0_i32_1 = arith.constant 0 : i32
    return %c0_i32, %c0_i32_0 : i32, i32
  }
  func.func @transform_6(%arg0: i32, %arg1: i32) -> (i32, i32) {
    %c0_i32 = arith.constant 0 : i32
    %c0_i32_0 = arith.constant 0 : i32
    %c0_i32_1 = arith.constant 0 : i32
    return %c0_i32, %c0_i32_0 : i32, i32
  }
  func.func @transform_7(%arg0: i32, %arg1: i32) -> (i32, i32) {
    %c0_i32 = arith.constant 0 : i32
    %c0_i32_0 = arith.constant 0 : i32
    %c0_i32_1 = arith.constant 0 : i32
    return %c0_i32, %c0_i32_0 : i32, i32
  }
  func.func @transform_8(%arg0: i32, %arg1: i32) -> (i32, i32) {
    %c0_i32 = arith.constant 0 : i32
    %c0_i32_0 = arith.constant 0 : i32
    %c0_i32_1 = arith.constant 0 : i32
    return %c0_i32, %c0_i32_0 : i32, i32
  }
  func.func @transform_9(%arg0: i32, %arg1: i32) -> (i32, i32, i32, i32) {
    %c0_i32 = arith.constant 0 : i32
    %c0_i32_0 = arith.constant 0 : i32
    %c0_i32_1 = arith.constant 0 : i32
    return %arg0, %c0_i32, %c0_i32_0, %arg1 : i32, i32, i32, i32
  }
}

</mosaic_0001>

<llo_original>
// kernel: tpu_custom_call.1
$region0: #{tpu_custom_call.1}
  #allocation0 [shape = 'u32[]', space=smem, size = 0x4, offset = 0x4, fixed_abs, tag = 'smem constant byte address 0x4 - core index']
  #allocation1 [shape = 'u32[144,128]{1,0:T(1,128)}', space=vmem, size = 0x12000, scoped, tag = 'internal scratch']
  %s0 = inlined_call_operand.vmem [shape: f32[2,16,256], index: 0, kind: input, shape index: {}]
  %s1 = inlined_call_operand.vmem [shape: f32[32,16], index: 1, kind: input, shape index: {}]
  %s2 = inlined_call_operand.vmem [shape: f32[32,1], index: 2, kind: input, shape index: {}]
  %s3 = inlined_call_operand.vmem [shape: f32[64,32], index: 3, kind: input, shape index: {}]
  %s4 = inlined_call_operand.vmem [shape: f32[64,1], index: 4, kind: input, shape index: {}]
  %s5 = inlined_call_operand.vmem [shape: f32[64,32], index: 5, kind: input, shape index: {}]
  %s6 = inlined_call_operand.vmem [shape: f32[64,1], index: 6, kind: input, shape index: {}]
  %s7 = inlined_call_operand.vmem [shape: f32[64,32], index: 7, kind: input, shape index: {}]
  %s8 = inlined_call_operand.vmem [shape: f32[64,1], index: 8, kind: input, shape index: {}]
  %s9 = inlined_call_operand.hbm [shape: f32[2,8,32,256], index: 9, kind: output, shape index: {}]
  %s10 = sld [smem:[#allocation0]]
  $region69: #{tpu_custom_call.1} parent=0
    _
  %s12 = ssub.s32 1, %s10
  %s13 = scalar_select 0, %s12, %s10
  $region1: #{tpu_custom_call.1} parent=0
    #allocation2 [shape = 'u8[524288]{0}', space=vmem, size = 0x80000, scoped, tag = 'output window, operand 0']
    #allocation3 [shape = 's32[2]{0}', space=sflag, size = 0x8, scoped, tag = 'scoped memory for tpu_custom_call.1']
    %14 = vsyncpa [#allocation3], 0
    %s15 = scalar_lea.sflag [#allocation3], 1
    %16 = vsyncpa %s15, 0
    loop: start=0, step=1, limit=4
    $region2: #{tpu_custom_call.1} parent=1 // loop_pre_header
      _
    $region3: #{tpu_custom_call.1} parent=1 // loop_header
      %s18 = sphi 0, %s22
      %p19 = scmp.ge.s32.totalorder %s18, 4
      %s25 = sphi 0, %s37
      %s26 = sphi 0, %s33
      %s27 = sphi 0, %s25
      %s28 = sphi 0, %s26
      %s29 = sphi 0, %s27
      %s30 = sphi 0, %s28
      %s42 = sphi 0, %s44
      %s45 = sphi 0, %s42
      %s46 = sphi 0, %s45
      %s62 = sphi 0, %s46
      %s66 = sphi 0, %s66
      %s68 = sphi 0, %s66
      %s69 = sphi 0, %s68
      %s83 = sphi 0, %s69
      %s87 = sphi 0, %s87
      %s89 = sphi 0, %s87
      %s90 = sphi 0, %s89
      %s104 = sphi 0, %s90
      %s108 = sphi 0, %s108
      %s110 = sphi 0, %s108
      %s111 = sphi 0, %s110
      %s125 = sphi 0, %s111
      %s129 = sphi 0, %s129
      %s131 = sphi 0, %s129
      %s132 = sphi 0, %s131
      %s146 = sphi 0, %s132
      %s150 = sphi 0, %s150
      %s152 = sphi 0, %s150
      %s153 = sphi 0, %s152
      %s167 = sphi 0, %s153
      %s171 = sphi 0, %s171
      %s173 = sphi 0, %s171
      %s174 = sphi 0, %s173
      %s188 = sphi 0, %s174
      %s192 = sphi 0, %s192
      %s194 = sphi 0, %s192
      %s195 = sphi 0, %s194
      %s209 = sphi 0, %s195
      %s213 = sphi 0, %s213
      %s215 = sphi 0, %s213
      %s216 = sphi 0, %s215
      %s230 = sphi 0, %s216
      %s238 = sphi 0, %s240
      %s241 = sphi 0, %s238
      %s242 = sphi 0, %s241
      %s258 = sphi 0, %s242
    $region4: #{tpu_custom_call.1} parent=1 // loop_header_branch
      %21 = sbr.rel (%p19) target = $region8
    $region5: #{tpu_custom_call.1} parent=1 // loop_body
      %s23 = ssub.s32 %s18, 1
      %s24 = ssub.s32 %s18, 2
      %s31 = sadd.s32 1, %s26
      %p32 = scmp.ge.s32.totalorder %s31, 1
      %s33 = scalar_select %p32, 0, %s31
      %s34 = sadd.s32 1, %s25
      %s35 = scalar_select %p32, %s34, %s25
      %p36 = scmp.ge.s32.totalorder %s35, 2
      %s37 = scalar_select %p36, 0, %s35
      %s38 = ssub.s32 %s25, %s37
      %s39 = ssub.s32 %s26, %s33
      %s40 = sor.u32 %s38, %s39
      %p41 = scmp.eq.s32.totalorder %s40, 0
      %s43 = sadd.s32 %s42, 1
      %s44 = scalar_select %p41, %s42, %s43
      %p47 = pneg %p41
      %p48 = scmp.eq.s32.totalorder %s18, 1
      %p49 = por %p47, %p48
      %p50 = scmp.ne.s32.totalorder %s42, %s45
      %p51 = scmp.eq.s32.totalorder %s18, 0
      %p52 = por %p50, %p51
      %p53 = scmp.ne.s32.totalorder %s42, %s45
      %p54 = scmp.eq.s32.totalorder %s23, 1
      %p55 = por %p53, %p54
      %p56 = scmp.ne.s32.totalorder %s45, %s46
      %p57 = scmp.eq.s32.totalorder %s23, 0
      %p58 = por %p56, %p57
      %p59 = scmp.ne.s32.totalorder %s45, %s46
      %p60 = scmp.eq.s32.totalorder %s24, 1
      %p61 = por %p59, %p60
      %p63 = scmp.ne.s32.totalorder %s46, %s62
      %p64 = scmp.eq.s32.totalorder %s24, 0
      %p65 = por %p63, %p64
      %s67 = sadd.s32 %s66, 1
      %p70 = scmp.eq.s32.totalorder %s18, 1
      %p71 = scmp.ne.s32.totalorder %s66, %s68
      %p72 = scmp.eq.s32.totalorder %s18, 0
      %p73 = por %p71, %p72
      %p74 = scmp.ne.s32.totalorder %s66, %s68
      %p75 = scmp.eq.s32.totalorder %s23, 1
      %p76 = por %p74, %p75
      %p77 = scmp.ne.s32.totalorder %s68, %s69
      %p78 = scmp.eq.s32.totalorder %s23, 0
      %p79 = por %p77, %p78
      %p80 = scmp.ne.s32.totalorder %s68, %s69
      %p81 = scmp.eq.s32.totalorder %s24, 1
      %p82 = por %p80, %p81
      %p84 = scmp.ne.s32.totalorder %s69, %s83
      %p85 = scmp.eq.s32.totalorder %s24, 0
      %p86 = por %p84, %p85
      %s88 = sadd.s32 %s87, 1
      %p91 = scmp.eq.s32.totalorder %s18, 1
      %p92 = scmp.ne.s32.totalorder %s87, %s89
      %p93 = scmp.eq.s32.totalorder %s18, 0
      %p94 = por %p92, %p93
      %p95 = scmp.ne.s32.totalorder %s87, %s89
      %p96 = scmp.eq.s32.totalorder %s23, 1
      %p97 = por %p95, %p96
      %p98 = scmp.ne.s32.totalorder %s89, %s90
      %p99 = scmp.eq.s32.totalorder %s23, 0
      %p100 = por %p98, %p99
      %p101 = scmp.ne.s32.totalorder %s89, %s90
      %p102 = scmp.eq.s32.totalorder %s24, 1
      %p103 = por %p101, %p102
      %p105 = scmp.ne.s32.totalorder %s90, %s104
      %p106 = scmp.eq.s32.totalorder %s24, 0
      %p107 = por %p105, %p106
      %s109 = sadd.s32 %s108, 1
      %p112 = scmp.eq.s32.totalorder %s18, 1
      %p113 = scmp.ne.s32.totalorder %s108, %s110
      %p114 = scmp.eq.s32.totalorder %s18, 0
      %p115 = por %p113, %p114
      %p116 = scmp.ne.s32.totalorder %s108, %s110
      %p117 = scmp.eq.s32.totalorder %s23, 1
      %p118 = por %p116, %p117
      %p119 = scmp.ne.s32.totalorder %s110, %s111
      %p120 = scmp.eq.s32.totalorder %s23, 0
      %p121 = por %p119, %p120
      %p122 = scmp.ne.s32.totalorder %s110, %s111
      %p123 = scmp.eq.s32.totalorder %s24, 1
      %p124 = por %p122, %p123
      %p126 = scmp.ne.s32.totalorder %s111, %s125
      %p127 = scmp.eq.s32.totalorder %s24, 0
      %p128 = por %p126, %p127
      %s130 = sadd.s32 %s129, 1
      %p133 = scmp.eq.s32.totalorder %s18, 1
      %p134 = scmp.ne.s32.totalorder %s129, %s131
      %p135 = scmp.eq.s32.totalorder %s18, 0
      %p136 = por %p134, %p135
      %p137 = scmp.ne.s32.totalorder %s129, %s131
      %p138 = scmp.eq.s32.totalorder %s23, 1
      %p139 = por %p137, %p138
      %p140 = scmp.ne.s32.totalorder %s131, %s132
      %p141 = scmp.eq.s32.totalorder %s23, 0
      %p142 = por %p140, %p141
      %p143 = scmp.ne.s32.totalorder %s131, %s132
      %p144 = scmp.eq.s32.totalorder %s24, 1
      %p145 = por %p143, %p144
      %p147 = scmp.ne.s32.totalorder %s132, %s146
      %p148 = scmp.eq.s32.totalorder %s24, 0
      %p149 = por %p147, %p148
      %s151 = sadd.s32 %s150, 1
      %p154 = scmp.eq.s32.totalorder %s18, 1
      %p155 = scmp.ne.s32.totalorder %s150, %s152
      %p156 = scmp.eq.s32.totalorder %s18, 0
      %p157 = por %p155, %p156
      %p158 = scmp.ne.s32.totalorder %s150, %s152
      %p159 = scmp.eq.s32.totalorder %s23, 1
      %p160 = por %p158, %p159
      %p161 = scmp.ne.s32.totalorder %s152, %s153
      %p162 = scmp.eq.s32.totalorder %s23, 0
      %p163 = por %p161, %p162
      %p164 = scmp.ne.s32.totalorder %s152, %s153
      %p165 = scmp.eq.s32.totalorder %s24, 1
      %p166 = por %p164, %p165
      %p168 = scmp.ne.s32.totalorder %s153, %s167
      %p169 = scmp.eq.s32.totalorder %s24, 0
      %p170 = por %p168, %p169
      %s172 = sadd.s32 %s171, 1
      %p175 = scmp.eq.s32.totalorder %s18, 1
      %p176 = scmp.ne.s32.totalorder %s171, %s173
      %p177 = scmp.eq.s32.totalorder %s18, 0
      %p178 = por %p176, %p177
      %p179 = scmp.ne.s32.totalorder %s171, %s173
      %p180 = scmp.eq.s32.totalorder %s23, 1
      %p181 = por %p179, %p180
      %p182 = scmp.ne.s32.totalorder %s173, %s174
      %p183 = scmp.eq.s32.totalorder %s23, 0
      %p184 = por %p182, %p183
      %p185 = scmp.ne.s32.totalorder %s173, %s174
      %p186 = scmp.eq.s32.totalorder %s24, 1
      %p187 = por %p185, %p186
      %p189 = scmp.ne.s32.totalorder %s174, %s188
      %p190 = scmp.eq.s32.totalorder %s24, 0
      %p191 = por %p189, %p190
      %s193 = sadd.s32 %s192, 1
      %p196 = scmp.eq.s32.totalorder %s18, 1
      %p197 = scmp.ne.s32.totalorder %s192, %s194
      %p198 = scmp.eq.s32.totalorder %s18, 0
      %p199 = por %p197, %p198
      %p200 = scmp.ne.s32.totalorder %s192, %s194
      %p201 = scmp.eq.s32.totalorder %s23, 1
      %p202 = por %p200, %p201
      %p203 = scmp.ne.s32.totalorder %s194, %s195
      %p204 = scmp.eq.s32.totalorder %s23, 0
      %p205 = por %p203, %p204
      %p206 = scmp.ne.s32.totalorder %s194, %s195
      %p207 = scmp.eq.s32.totalorder %s24, 1
      %p208 = por %p206, %p207
      %p210 = scmp.ne.s32.totalorder %s195, %s209
      %p211 = scmp.eq.s32.totalorder %s24, 0
      %p212 = por %p210, %p211
      %s214 = sadd.s32 %s213, 1
      %p217 = scmp.eq.s32.totalorder %s18, 1
      %p218 = scmp.ne.s32.totalorder %s213, %s215
      %p219 = scmp.eq.s32.totalorder %s18, 0
      %p220 = por %p218, %p219
      %p221 = scmp.ne.s32.totalorder %s213, %s215
      %p222 = scmp.eq.s32.totalorder %s23, 1
      %p223 = por %p221, %p222
      %p224 = scmp.ne.s32.totalorder %s215, %s216
      %p225 = scmp.eq.s32.totalorder %s23, 0
      %p226 = por %p224, %p225
      %p227 = scmp.ne.s32.totalorder %s215, %s216
      %p228 = scmp.eq.s32.totalorder %s24, 1
      %p229 = por %p227, %p228
      %p231 = scmp.ne.s32.totalorder %s216, %s230
      %p232 = scmp.eq.s32.totalorder %s24, 0
      %p233 = por %p231, %p232
      %s234 = ssub.s32 %s25, %s37
      %s235 = ssub.s32 %s26, %s33
      %s236 = sor.u32 %s234, %s235
      %p237 = scmp.eq.s32.totalorder %s236, 0
      %s239 = sadd.s32 %s238, 1
      %s240 = scalar_select %p237, %s238, %s239
      %p243 = pneg %p237
      %p244 = scmp.eq.s32.totalorder %s18, 1
      %p245 = por %p243, %p244
      %p246 = scmp.ne.s32.totalorder %s238, %s241
      %p247 = scmp.eq.s32.totalorder %s18, 0
      %p248 = por %p246, %p247
      %p249 = scmp.ne.s32.totalorder %s238, %s241
      %p250 = scmp.eq.s32.totalorder %s23, 1
      %p251 = por %p249, %p250
      %p252 = scmp.ne.s32.totalorder %s241, %s242
      %p253 = scmp.eq.s32.totalorder %s23, 0
      %p254 = por %p252, %p253
      %p255 = scmp.ne.s32.totalorder %s241, %s242
      %p256 = scmp.eq.s32.totalorder %s24, 1
      %p257 = por %p255, %p256
      %p259 = scmp.ne.s32.totalorder %s242, %s258
      %p260 = scmp.eq.s32.totalorder %s24, 0
      %p261 = por %p259, %p260
      %p262 = scmp.le.s32.totalorder 1, %s18
      %p263 = scmp.lt.s32.totalorder %s18, 3
      %p264 = pnand %p262, %p263
      %p265 = pneg %p264
      // Predicated region
      $region9: #{tpu_custom_call.1} parent=5 // pred_check
        _
      $region10: #{tpu_custom_call.1} parent=5 // pred_check_branch
        %267 = sbr.rel (%p264) target = $region12
      $region11: #{tpu_custom_call.1} parent=5 // pred_region
        %s268 = ssub.s32 %s18, 1
        // Predicated region
        $region13: #{tpu_custom_call.1} parent=11 // pred_check
          %p269 = pneg %p79
        $region14: #{tpu_custom_call.1} parent=11 // pred_check_branch
          %271 = sbr.rel (%p269) target = $region16
        $region15: #{tpu_custom_call.1} parent=11 // pred_region
          _
        $region16: #{tpu_custom_call.1} parent=11 // pred_fallthru
          _
        // Predicated region
        $region17: #{tpu_custom_call.1} parent=11 // pred_check
          %p272 = pneg %p100
        $region18: #{tpu_custom_call.1} parent=11 // pred_check_branch
          %274 = sbr.rel (%p272) target = $region20
        $region19: #{tpu_custom_call.1} parent=11 // pred_region
          _
        $region20: #{tpu_custom_call.1} parent=11 // pred_fallthru
          _
        // Predicated region
        $region21: #{tpu_custom_call.1} parent=11 // pred_check
          %p275 = pneg %p121
        $region22: #{tpu_custom_call.1} parent=11 // pred_check_branch
          %277 = sbr.rel (%p275) target = $region24
        $region23: #{tpu_custom_call.1} parent=11 // pred_region
          _
        $region24: #{tpu_custom_call.1} parent=11 // pred_fallthru
          _
        // Predicated region
        $region25: #{tpu_custom_call.1} parent=11 // pred_check
          %p278 = pneg %p142
        $region26: #{tpu_custom_call.1} parent=11 // pred_check_branch
          %280 = sbr.rel (%p278) target = $region28
        $region27: #{tpu_custom_call.1} parent=11 // pred_region
          _
        $region28: #{tpu_custom_call.1} parent=11 // pred_fallthru
          _
        // Predicated region
        $region29: #{tpu_custom_call.1} parent=11 // pred_check
          %p281 = pneg %p163
        $region30: #{tpu_custom_call.1} parent=11 // pred_check_branch
          %283 = sbr.rel (%p281) target = $region32
        $region31: #{tpu_custom_call.1} parent=11 // pred_region
          _
        $region32: #{tpu_custom_call.1} parent=11 // pred_fallthru
          _
        // Predicated region
        $region33: #{tpu_custom_call.1} parent=11 // pred_check
          %p284 = pneg %p184
        $region34: #{tpu_custom_call.1} parent=11 // pred_check_branch
          %286 = sbr.rel (%p284) target = $region36
        $region35: #{tpu_custom_call.1} parent=11 // pred_region
          _
        $region36: #{tpu_custom_call.1} parent=11 // pred_fallthru
          _
        // Predicated region
        $region37: #{tpu_custom_call.1} parent=11 // pred_check
          %p287 = pneg %p205
        $region38: #{tpu_custom_call.1} parent=11 // pred_check_branch
          %289 = sbr.rel (%p287) target = $region40
        $region39: #{tpu_custom_call.1} parent=11 // pred_region
          _
        $region40: #{tpu_custom_call.1} parent=11 // pred_fallthru
          _
        // Predicated region
        $region41: #{tpu_custom_call.1} parent=11 // pred_check
          %p290 = pneg %p226
        $region42: #{tpu_custom_call.1} parent=11 // pred_check_branch
          %292 = sbr.rel (%p290) target = $region44
        $region43: #{tpu_custom_call.1} parent=11 // pred_region
          _
        $region44: #{tpu_custom_call.1} parent=11 // pred_fallthru
          _
      $region12: #{tpu_custom_call.1} parent=5 // pred_fallthru
        _
      %p293 = scmp.lt.s32.totalorder %s18, 2
      // Predicated region
      $region45: #{tpu_custom_call.1} parent=5 // pred_check
        %p294 = pneg %p293
      $region46: #{tpu_custom_call.1} parent=5 // pred_check_branch
        %296 = sbr.rel (%p294) target = $region48
      $region47: #{tpu_custom_call.1} parent=5 // pred_region
        // Predicated region
        $region49: #{tpu_custom_call.1} parent=47 // pred_check
          %p297 = pneg %p52
        $region50: #{tpu_custom_call.1} parent=47 // pred_check_branch
          %299 = sbr.rel (%p297) target = $region52
        $region51: #{tpu_custom_call.1} parent=47 // pred_region
          %s300 = smul.u32 2, %s26
          %p301 = scmp.lt.s32.totalorder %s25, 1
          %s302 = scalar_select %p301, %s25, 1
          %p303 = scmp.lt.s32.totalorder %s300, 1
          %s304 = scalar_select %p303, %s300, 1
          %s305 = smul.addr %s302, 4
          %s306 = sadd.s32 %s304, %s305
          %s307 = smul.addr %s306, 8
          %s308 = scalar_lea.vmem %s0, %s307
          %s309 = smul.u32 2, %s26
        $region52: #{tpu_custom_call.1} parent=47 // pred_fallthru
          _
      $region48: #{tpu_custom_call.1} parent=5 // pred_fallthru
        _
      %p310 = scmp.le.s32.totalorder 1, %s18
      %p311 = scmp.lt.s32.totalorder %s18, 3
      %p312 = pnand %p310, %p311
      %p313 = pneg %p312
      // Predicated region
      $region53: #{tpu_custom_call.1} parent=5 // pred_check
        _
      $region54: #{tpu_custom_call.1} parent=5 // pred_check_branch
        %315 = sbr.rel (%p312) target = $region56
      $region55: #{tpu_custom_call.1} parent=5 // pred_region
        %s316 = ssub.s32 %s18, 1
        %s317 = smul.u32 2, %s28
        %p318 = scmp.lt.s32.totalorder %s27, 1
        %s319 = scalar_select %p318, %s27, 1
        %p320 = scmp.lt.s32.totalorder %s317, 1
        %s321 = scalar_select %p320, %s317, 1
        %s322 = smul.addr %s319, 4
        %s323 = sadd.s32 %s321, %s322
        %s324 = smul.addr %s323, 8
        %s325 = scalar_lea.vmem %s0, %s324
        %p326 = pneg %p58
        %p327 = pneg %p55
        %p328 = pneg %p79
        %p329 = pneg %p76
        %p330 = pneg %p100
        %p331 = pneg %p97
        %p332 = pneg %p121
        %p333 = pneg %p118
        %p334 = pneg %p142
        %p335 = pneg %p139
        %p336 = pneg %p163
        %p337 = pneg %p160
        %p338 = pneg %p184
        %p339 = pneg %p181
        %p340 = pneg %p205
        %p341 = pneg %p202
        %p342 = pneg %p226
        %p343 = pneg %p223
        %p344 = pneg %p254
        %p345 = pneg %p251
        %s346 = sand.u32 %s241, 1
        %s347 = scalar_lea.sflag [#allocation3], %s346
        %s348 = sand.u32 %s241, 1
        %s349 = smul.addr %s348, 512
        %s350 = scalar_lea.vmem [#allocation2], %s349
        %s351 = smul.u32 2, %s28
        %p352 = scmp.lt.s32.totalorder %s27, 1
        %s353 = scalar_select %p352, %s27, 1
        %p354 = scmp.lt.s32.totalorder %s351, 1
        %s355 = scalar_select %p354, %s351, 1
        %s356 = smul.addr %s353, 4
        %s357 = sadd.s32 %s355, %s356
        %s358 = smul.addr %s357, 8
        %s359 = scalar_lea.vmem %s0, %s358
        %s360 = smul.u32 2, %s28
        %s361 = smul.u32 2, %s28
        %v362 = vld [vmem:[%s359] sm:$0xff]
        %v363 = vld [vmem:[%s359 + $0x8] sm:$0xff]
        %v364 = vld [vmem:[%s359 + $0x10] sm:$0xff]
        %v365 = vld [vmem:[%s359 + $0x18] sm:$0xff]
        %v366 = vld [vmem:[%s1] sm:$0xff]
        %v367 = vld [vmem:[%s1 + $0x8] sm:$0xff]
        %v368 = vld [vmem:[%s1 + $0x10] sm:$0xff]
        %v369 = vld [vmem:[%s1 + $0x18] sm:$0xff]
        %v370 = vld [vmem:[%s2] sm:$0xff]
        %v371 = vld [vmem:[%s2 + $0x8] sm:$0xff]
        %v372 = vld [vmem:[%s2 + $0x10] sm:$0xff]
        %v373 = vld [vmem:[%s2 + $0x18] sm:$0xff]
        %375 = vset.pattern.permute.xlu0 0
        %376 = vperm.xlu0 %375, %v370
        %v377 = vpop.permute.xlu0 %376
        %380 = vset.pattern.permute.xlu0 0
        %381 = vperm.xlu0 %380, %v371
        %v382 = vpop.permute.xlu0 %381
        %385 = vset.pattern.permute.xlu0 0
        %386 = vperm.xlu0 %385, %v372
        %v387 = vpop.permute.xlu0 %386
        %390 = vset.pattern.permute.xlu0 0
        %391 = vperm.xlu0 %390, %v373
        %v392 = vpop.permute.xlu0 %391
        %vm394 = vcmask 130048
        %v396 = vsel %vm394, %v366, 0
        %v399 = vsel %vm394, %v367, 0
        %v402 = vsel %vm394, %v368, 0
        %v405 = vsel %vm394, %v369, 0
        %407 = vmatprep.subr.mxu0 %v363
        %408 = vmatpush1.msra.mxu0 %v362
        %409 = vmatprep.subr.mxu0 %v365
        %410 = vmatpush1.msra.mxu0 %v364
        %411 = vmatprep.subr.mxu0 0.0
        %412 = vmatpush1.msra.mxu0 0.0
        %413 = vmatprep.subr.mxu0 0.0
        %414 = vmatpush1.msra.mxu0 0.0
        %415 = vmatprep.subr.mxu0 0.0
        %416 = vmatpush1.msra.mxu0 0.0
        %417 = vmatprep.subr.mxu0 0.0
        %418 = vmatpush1.msra.mxu0 0.0
        %419 = vmatprep.subr.mxu0 0.0
        %420 = vmatpush1.msra.mxu0 0.0
        %421 = vmatprep.subr.mxu0 0.0
        %422 = vmatpush1.msra.mxu0 0.0
        %423 = vmatprep.subr.mxu0 0.0
        %424 = vmatpush1.msra.mxu0 0.0
        %425 = vmatprep.subr.mxu0 0.0
        %426 = vmatpush1.msra.mxu0 0.0
        %427 = vmatprep.subr.mxu0 0.0
        %428 = vmatpush1.msra.mxu0 0.0
        %429 = vmatprep.subr.mxu0 0.0
        %430 = vmatpush1.msra.mxu0 0.0
        %431 = vmatprep.subr.mxu0 0.0
        %432 = vmatpush1.msra.mxu0 0.0
        %433 = vmatprep.subr.mxu0 0.0
        %434 = vmatpush1.msra.mxu0 0.0
        %435 = vmatprep.subr.mxu0 0.0
        %436 = vmatpush1.msra.mxu0 0.0
        %437 = vmatprep.subr.mxu0 0.0
        %438 = vmatpush1.msra.mxu0 0.0
        %439 = vmatprep.subr.mxu0 0.0
        %440 = vmatpush1.msra.mxu0 0.0
        %441 = vmatprep.subr.mxu0 0.0
        %442 = vmatpush1.msra.mxu0 0.0
        %443 = vmatprep.subr.mxu0 0.0
        %444 = vmatpush1.msra.mxu0 0.0
        %445 = vmatprep.subr.mxu0 0.0
        %446 = vmatpush1.msra.mxu0 0.0
        %447 = vmatprep.subr.mxu0 0.0
        %448 = vmatpush1.msra.mxu0 0.0
        %449 = vmatprep.subr.mxu0 0.0
        %450 = vmatpush1.msra.mxu0 0.0
        %451 = vmatprep.subr.mxu0 0.0
        %452 = vmatpush1.msra.mxu0 0.0
        %453 = vmatprep.subr.mxu0 0.0
        %454 = vmatpush1.msra.mxu0 0.0
        %455 = vmatprep.subr.mxu0 0.0
        %456 = vmatpush1.msra.mxu0 0.0
        %457 = vmatprep.subr.mxu0 0.0
        %458 = vmatpush1.msra.mxu0 0.0
        %459 = vmatprep.subr.mxu0 0.0
        %460 = vmatpush1.msra.mxu0 0.0
        %461 = vmatprep.subr.mxu0 0.0
        %462 = vmatpush1.msra.mxu0 0.0
        %463 = vmatprep.subr.mxu0 0.0
        %464 = vmatpush1.msra.mxu0 0.0
        %465 = vmatprep.subr.mxu0 0.0
        %466 = vmatpush1.msra.mxu0 0.0
        %467 = vmatprep.subr.mxu0 0.0
        %468 = vmatpush1.msra.mxu0 0.0
        %469 = vmatprep.subr.mxu0 0.0
        %470 = vmatpush1.msra.mxu0 0.0
        %471 = vmatprep.mubr.f32.mxu0 0.0
        %472 = vmatmul.mubr.f32.gmra.mrb[0].mxu0 %v396
        %v473 = vpop.f32.mrb[0].mxu0
        %v474 = vadd.f32 %v377, %v473
        %v475 = vpop.f32.mrb[0].mxu0
        %v476 = vadd.f32 %v377, %v475
        %477 = vmatprep.mubr.f32.mxu0 0.0
        %478 = vmatmul.mubr.f32.gmra.mrb[0].mxu0 %v399
        %v479 = vpop.f32.mrb[0].mxu0
        %v480 = vadd.f32 %v382, %v479
        %v481 = vpop.f32.mrb[0].mxu0
        %v482 = vadd.f32 %v382, %v481
        %483 = vmatprep.mubr.f32.mxu0 0.0
        %484 = vmatmul.mubr.f32.gmra.mrb[0].mxu0 %v402
        %v485 = vpop.f32.mrb[0].mxu0
        %v486 = vadd.f32 %v387, %v485
        %v487 = vpop.f32.mrb[0].mxu0
        %v488 = vadd.f32 %v387, %v487
        %489 = vmatprep.mubr.f32.mxu0 0.0
        %490 = vmatmul.mubr.f32.gmra.mrb[0].mxu0 %v405
        %v491 = vpop.f32.mrb[0].mxu0
        %v492 = vadd.f32 %v392, %v491
        %v493 = vpop.f32.mrb[0].mxu0
        %v494 = vadd.f32 %v392, %v493
        %495 = vdwg.mxu0
        %v496 = vmax.f32 %v474, 0.0
        %v497 = vmax.f32 %v476, 0.0
        %v498 = vmax.f32 %v480, 0.0
        %v499 = vmax.f32 %v482, 0.0
        %v500 = vmax.f32 %v486, 0.0
        %v501 = vmax.f32 %v488, 0.0
        %v502 = vmax.f32 %v492, 0.0
        %v503 = vmax.f32 %v494, 0.0
        %v504 = vld [vmem:[%s3] sm:$0xff]
        %v505 = vld [vmem:[%s3 + $0x8] sm:$0xff]
        %v506 = vld [vmem:[%s3 + $0x10] sm:$0xff]
        %v507 = vld [vmem:[%s3 + $0x18] sm:$0xff]
        %v508 = vld [vmem:[%s3 + $0x20] sm:$0xff]
        %v509 = vld [vmem:[%s3 + $0x28] sm:$0xff]
        %v510 = vld [vmem:[%s3 + $0x30] sm:$0xff]
        %v511 = vld [vmem:[%s3 + $0x38] sm:$0xff]
        %v512 = vld [vmem:[%s4] sm:$0xff]
        %v513 = vld [vmem:[%s4 + $0x8] sm:$0xff]
        %v514 = vld [vmem:[%s4 + $0x10] sm:$0xff]
        %v515 = vld [vmem:[%s4 + $0x18] sm:$0xff]
        %v516 = vld [vmem:[%s4 + $0x20] sm:$0xff]
        %v517 = vld [vmem:[%s4 + $0x28] sm:$0xff]
        %v518 = vld [vmem:[%s4 + $0x30] sm:$0xff]
        %v519 = vld [vmem:[%s4 + $0x38] sm:$0xff]
        %521 = vset.pattern.permute.xlu0 0
        %522 = vperm.xlu0 %521, %v512
        %v523 = vpop.permute.xlu0 %522
        %526 = vset.pattern.permute.xlu0 0
        %527 = vperm.xlu0 %526, %v513
        %v528 = vpop.permute.xlu0 %527
        %531 = vset.pattern.permute.xlu0 0
        %532 = vperm.xlu0 %531, %v514
        %v533 = vpop.permute.xlu0 %532
        %536 = vset.pattern.permute.xlu0 0
        %537 = vperm.xlu0 %536, %v515
        %v538 = vpop.permute.xlu0 %537
        %541 = vset.pattern.permute.xlu0 0
        %542 = vperm.xlu0 %541, %v516
        %v543 = vpop.permute.xlu0 %542
        %546 = vset.pattern.permute.xlu0 0
        %547 = vperm.xlu0 %546, %v517
        %v548 = vpop.permute.xlu0 %547
        %551 = vset.pattern.permute.xlu0 0
        %552 = vperm.xlu0 %551, %v518
        %v553 = vpop.permute.xlu0 %552
        %556 = vset.pattern.permute.xlu0 0
        %557 = vperm.xlu0 %556, %v519
        %v558 = vpop.permute.xlu0 %557
        %vm560 = vcmask 261120
        %v562 = vsel %vm560, %v504, 0
        %v565 = vsel %vm560, %v505, 0
        %v568 = vsel %vm560, %v506, 0
        %v571 = vsel %vm560, %v507, 0
        %v574 = vsel %vm560, %v508, 0
        %v577 = vsel %vm560, %v509, 0
        %v580 = vsel %vm560, %v510, 0
        %v583 = vsel %vm560, %v511, 0
        %585 = vmatprep.subr.mxu0 %v497
        %586 = vmatpush1.msra.mxu0 %v496
        %587 = vmatprep.subr.mxu0 %v499
        %588 = vmatpush1.msra.mxu0 %v498
        %589 = vmatprep.subr.mxu0 %v501
        %590 = vmatpush1.msra.mxu0 %v500
        %591 = vmatprep.subr.mxu0 %v503
        %592 = vmatpush1.msra.mxu0 %v502
        %593 = vmatprep.subr.mxu0 0.0
        %594 = vmatpush1.msra.mxu0 0.0
        %595 = vmatprep.subr.mxu0 0.0
        %596 = vmatpush1.msra.mxu0 0.0
        %597 = vmatprep.subr.mxu0 0.0
        %598 = vmatpush1.msra.mxu0 0.0
        %599 = vmatprep.subr.mxu0 0.0
        %600 = vmatpush1.msra.mxu0 0.0
        %601 = vmatprep.subr.mxu0 0.0
        %602 = vmatpush1.msra.mxu0 0.0
        %603 = vmatprep.subr.mxu0 0.0
        %604 = vmatpush1.msra.mxu0 0.0
        %605 = vmatprep.subr.mxu0 0.0
        %606 = vmatpush1.msra.mxu0 0.0
        %607 = vmatprep.subr.mxu0 0.0
        %608 = vmatpush1.msra.mxu0 0.0
        %609 = vmatprep.subr.mxu0 0.0
        %610 = vmatpush1.msra.mxu0 0.0
        %611 = vmatprep.subr.mxu0 0.0
        %612 = vmatpush1.msra.mxu0 0.0
        %613 = vmatprep.subr.mxu0 0.0
        %614 = vmatpush1.msra.mxu0 0.0
        %615 = vmatprep.subr.mxu0 0.0
        %616 = vmatpush1.msra.mxu0 0.0
        %617 = vmatprep.subr.mxu0 0.0
        %618 = vmatpush1.msra.mxu0 0.0
        %619 = vmatprep.subr.mxu0 0.0
        %620 = vmatpush1.msra.mxu0 0.0
        %621 = vmatprep.subr.mxu0 0.0
        %622 = vmatpush1.msra.mxu0 0.0
        %623 = vmatprep.subr.mxu0 0.0
        %624 = vmatpush1.msra.mxu0 0.0
        %625 = vmatprep.subr.mxu0 0.0
        %626 = vmatpush1.msra.mxu0 0.0
        %627 = vmatprep.subr.mxu0 0.0
        %628 = vmatpush1.msra.mxu0 0.0
        %629 = vmatprep.subr.mxu0 0.0
        %630 = vmatpush1.msra.mxu0 0.0
        %631 = vmatprep.subr.mxu0 0.0
        %632 = vmatpush1.msra.mxu0 0.0
        %633 = vmatprep.subr.mxu0 0.0
        %634 = vmatpush1.msra.mxu0 0.0
        %635 = vmatprep.subr.mxu0 0.0
        %636 = vmatpush1.msra.mxu0 0.0
        %637 = vmatprep.subr.mxu0 0.0
        %638 = vmatpush1.msra.mxu0 0.0
        %639 = vmatprep.subr.mxu0 0.0
        %640 = vmatpush1.msra.mxu0 0.0
        %641 = vmatprep.subr.mxu0 0.0
        %642 = vmatpush1.msra.mxu0 0.0
        %643 = vmatprep.subr.mxu0 0.0
        %644 = vmatpush1.msra.mxu0 0.0
        %645 = vmatprep.subr.mxu0 0.0
        %646 = vmatpush1.msra.mxu0 0.0
        %647 = vmatprep.subr.mxu0 0.0
        %648 = vmatpush1.msra.mxu0 0.0
        %649 = vmatprep.mubr.f32.mxu0 0.0
        %650 = vmatmul.mubr.f32.gmra.mrb[0].mxu0 %v562
        %v651 = vpop.f32.mrb[0].mxu0
        %v652 = vadd.f32 %v523, %v651
        %v653 = vpop.f32.mrb[0].mxu0
        %v654 = vadd.f32 %v523, %v653
        %655 = vmatprep.mubr.f32.mxu0 0.0
        %656 = vmatmul.mubr.f32.gmra.mrb[0].mxu0 %v565
        %v657 = vpop.f32.mrb[0].mxu0
        %v658 = vadd.f32 %v528, %v657
        %v659 = vpop.f32.mrb[0].mxu0
        %v660 = vadd.f32 %v528, %v659
        %661 = vmatprep.mubr.f32.mxu0 0.0
        %662 = vmatmul.mubr.f32.gmra.mrb[0].mxu0 %v568
        %v663 = vpop.f32.mrb[0].mxu0
        %v664 = vadd.f32 %v533, %v663
        %v665 = vpop.f32.mrb[0].mxu0
        %v666 = vadd.f32 %v533, %v665
        %667 = vmatprep.mubr.f32.mxu0 0.0
        %668 = vmatmul.mubr.f32.gmra.mrb[0].mxu0 %v571
        %v669 = vpop.f32.mrb[0].mxu0
        %v670 = vadd.f32 %v538, %v669
        %v671 = vpop.f32.mrb[0].mxu0
        %v672 = vadd.f32 %v538, %v671
        %673 = vmatprep.mubr.f32.mxu0 0.0
        %674 = vmatmul.mubr.f32.gmra.mrb[0].mxu0 %v574
        %v675 = vpop.f32.mrb[0].mxu0
        %v676 = vadd.f32 %v543, %v675
        %v677 = vpop.f32.mrb[0].mxu0
        %v678 = vadd.f32 %v543, %v677
        %679 = vmatprep.mubr.f32.mxu0 0.0
        %680 = vmatmul.mubr.f32.gmra.mrb[0].mxu0 %v577
        %v681 = vpop.f32.mrb[0].mxu0
        %v682 = vadd.f32 %v548, %v681
        %v683 = vpop.f32.mrb[0].mxu0
        %v684 = vadd.f32 %v548, %v683
        %685 = vmatprep.mubr.f32.mxu0 0.0
        %686 = vmatmul.mubr.f32.gmra.mrb[0].mxu0 %v580
        %v687 = vpop.f32.mrb[0].mxu0
        %v688 = vadd.f32 %v553, %v687
        %v689 = vpop.f32.mrb[0].mxu0
        %v690 = vadd.f32 %v553, %v689
        %691 = vmatprep.mubr.f32.mxu0 0.0
        %692 = vmatmul.mubr.f32.gmra.mrb[0].mxu0 %v583
        %v693 = vpop.f32.mrb[0].mxu0
        %v694 = vadd.f32 %v558, %v693
        %v695 = vpop.f32.mrb[0].mxu0
        %v696 = vadd.f32 %v558, %v695
        %697 = vdwg.mxu0
        %v698 = vld [vmem:[%s5] sm:$0xff]
        %v699 = vld [vmem:[%s5 + $0x8] sm:$0xff]
        %v700 = vld [vmem:[%s5 + $0x10] sm:$0xff]
        %v701 = vld [vmem:[%s5 + $0x18] sm:$0xff]
        %v702 = vld [vmem:[%s5 + $0x20] sm:$0xff]
        %v703 = vld [vmem:[%s5 + $0x28] sm:$0xff]
        %v704 = vld [vmem:[%s5 + $0x30] sm:$0xff]
        %v705 = vld [vmem:[%s5 + $0x38] sm:$0xff]
        %v706 = vld [vmem:[%s6] sm:$0xff]
        %v707 = vld [vmem:[%s6 + $0x8] sm:$0xff]
        %v708 = vld [vmem:[%s6 + $0x10] sm:$0xff]
        %v709 = vld [vmem:[%s6 + $0x18] sm:$0xff]
        %v710 = vld [vmem:[%s6 + $0x20] sm:$0xff]
        %v711 = vld [vmem:[%s6 + $0x28] sm:$0xff]
        %v712 = vld [vmem:[%s6 + $0x30] sm:$0xff]
        %v713 = vld [vmem:[%s6 + $0x38] sm:$0xff]
        %v714 = vld [vmem:[%s7] sm:$0xff]
        %v715 = vld [vmem:[%s7 + $0x8] sm:$0xff]
        %v716 = vld [vmem:[%s7 + $0x10] sm:$0xff]
        %v717 = vld [vmem:[%s7 + $0x18] sm:$0xff]
        %v718 = vld [vmem:[%s7 + $0x20] sm:$0xff]
        %v719 = vld [vmem:[%s7 + $0x28] sm:$0xff]
        %v720 = vld [vmem:[%s7 + $0x30] sm:$0xff]
        %v721 = vld [vmem:[%s7 + $0x38] sm:$0xff]
        %v722 = vld [vmem:[%s8] sm:$0xff]
        %v723 = vld [vmem:[%s8 + $0x8] sm:$0xff]
        %v724 = vld [vmem:[%s8 + $0x10] sm:$0xff]
        %v725 = vld [vmem:[%s8 + $0x18] sm:$0xff]
        %v726 = vld [vmem:[%s8 + $0x20] sm:$0xff]
        %v727 = vld [vmem:[%s8 + $0x28] sm:$0xff]
        %v728 = vld [vmem:[%s8 + $0x30] sm:$0xff]
        %v729 = vld [vmem:[%s8 + $0x38] sm:$0xff]
        %731 = vset.pattern.permute.xlu0 0
        %732 = vperm.xlu0 %731, %v706
        %v733 = vpop.permute.xlu0 %732
        %736 = vset.pattern.permute.xlu0 0
        %737 = vperm.xlu0 %736, %v707
        %v738 = vpop.permute.xlu0 %737
        %741 = vset.pattern.permute.xlu0 0
        %742 = vperm.xlu0 %741, %v708
        %v743 = vpop.permute.xlu0 %742
        %746 = vset.pattern.permute.xlu0 0
        %747 = vperm.xlu0 %746, %v709
        %v748 = vpop.permute.xlu0 %747
        %751 = vset.pattern.permute.xlu0 0
        %752 = vperm.xlu0 %751, %v710
        %v753 = vpop.permute.xlu0 %752
        %756 = vset.pattern.permute.xlu0 0
        %757 = vperm.xlu0 %756, %v711
        %v758 = vpop.permute.xlu0 %757
        %761 = vset.pattern.permute.xlu0 0
        %762 = vperm.xlu0 %761, %v712
        %v763 = vpop.permute.xlu0 %762
        %766 = vset.pattern.permute.xlu0 0
        %767 = vperm.xlu0 %766, %v713
        %v768 = vpop.permute.xlu0 %767
        %v771 = vsel %vm560, %v698, 0
        %v774 = vsel %vm560, %v699, 0
        %v777 = vsel %vm560, %v700, 0
        %v780 = vsel %vm560, %v701, 0
        %v783 = vsel %vm560, %v702, 0
        %v786 = vsel %vm560, %v703, 0
        %v789 = vsel %vm560, %v704, 0
        %v792 = vsel %vm560, %v705, 0
        %794 = vmatprep.subr.mxu0 %v654
        %795 = vmatpush1.msra.mxu0 %v652
        %796 = vmatprep.subr.mxu0 %v660
        %797 = vmatpush1.msra.mxu0 %v658
        %798 = vmatprep.subr.mxu0 %v666
        %799 = vmatpush1.msra.mxu0 %v664
        %800 = vmatprep.subr.mxu0 %v672
        %801 = vmatpush1.msra.mxu0 %v670
        %802 = vmatprep.subr.mxu0 0.0
        %803 = vmatpush1.msra.mxu0 0.0
        %804 = vmatprep.subr.mxu0 0.0
        %805 = vmatpush1.msra.mxu0 0.0
        %806 = vmatprep.subr.mxu0 0.0
        %807 = vmatpush1.msra.mxu0 0.0
        %808 = vmatprep.subr.mxu0 0.0
        %809 = vmatpush1.msra.mxu0 0.0
        %810 = vmatprep.subr.mxu0 0.0
        %811 = vmatpush1.msra.mxu0 0.0
        %812 = vmatprep.subr.mxu0 0.0
        %813 = vmatpush1.msra.mxu0 0.0
        %814 = vmatprep.subr.mxu0 0.0
        %815 = vmatpush1.msra.mxu0 0.0
        %816 = vmatprep.subr.mxu0 0.0
        %817 = vmatpush1.msra.mxu0 0.0
        %818 = vmatprep.subr.mxu0 0.0
        %819 = vmatpush1.msra.mxu0 0.0
        %820 = vmatprep.subr.mxu0 0.0
        %821 = vmatpush1.msra.mxu0 0.0
        %822 = vmatprep.subr.mxu0 0.0
        %823 = vmatpush1.msra.mxu0 0.0
        %824 = vmatprep.subr.mxu0 0.0
        %825 = vmatpush1.msra.mxu0 0.0
        %826 = vmatprep.subr.mxu0 0.0
        %827 = vmatpush1.msra.mxu0 0.0
        %828 = vmatprep.subr.mxu0 0.0
        %829 = vmatpush1.msra.mxu0 0.0
        %830 = vmatprep.subr.mxu0 0.0
        %831 = vmatpush1.msra.mxu0 0.0
        %832 = vmatprep.subr.mxu0 0.0
        %833 = vmatpush1.msra.mxu0 0.0
        %834 = vmatprep.subr.mxu0 0.0
        %835 = vmatpush1.msra.mxu0 0.0
        %836 = vmatprep.subr.mxu0 0.0
        %837 = vmatpush1.msra.mxu0 0.0
        %838 = vmatprep.subr.mxu0 0.0
        %839 = vmatpush1.msra.mxu0 0.0
        %840 = vmatprep.subr.mxu0 0.0
        %841 = vmatpush1.msra.mxu0 0.0
        %842 = vmatprep.subr.mxu0 0.0
        %843 = vmatpush1.msra.mxu0 0.0
        %844 = vmatprep.subr.mxu0 0.0
        %845 = vmatpush1.msra.mxu0 0.0
        %846 = vmatprep.subr.mxu0 0.0
        %847 = vmatpush1.msra.mxu0 0.0
        %848 = vmatprep.subr.mxu0 0.0
        %849 = vmatpush1.msra.mxu0 0.0
        %850 = vmatprep.subr.mxu0 0.0
        %851 = vmatpush1.msra.mxu0 0.0
        %852 = vmatprep.subr.mxu0 0.0
        %853 = vmatpush1.msra.mxu0 0.0
        %854 = vmatprep.subr.mxu0 0.0
        %855 = vmatpush1.msra.mxu0 0.0
        %856 = vmatprep.subr.mxu0 0.0
        %857 = vmatpush1.msra.mxu0 0.0
        %858 = vmatprep.mubr.f32.mxu0 0.0
        %859 = vmatmul.mubr.f32.gmra.mrb[0].mxu0 %v771
        %v860 = vpop.f32.mrb[0].mxu0
        %v861 = vadd.f32 %v733, %v860
        %v862 = vpop.f32.mrb[0].mxu0
        %v863 = vadd.f32 %v733, %v862
        %864 = vmatprep.mubr.f32.mxu0 0.0
        %865 = vmatmul.mubr.f32.gmra.mrb[0].mxu0 %v774
        %v866 = vpop.f32.mrb[0].mxu0
        %v867 = vadd.f32 %v738, %v866
        %v868 = vpop.f32.mrb[0].mxu0
        %v869 = vadd.f32 %v738, %v868
        %870 = vmatprep.mubr.f32.mxu0 0.0
        %871 = vmatmul.mubr.f32.gmra.mrb[0].mxu0 %v777
        %v872 = vpop.f32.mrb[0].mxu0
        %v873 = vadd.f32 %v743, %v872
        %v874 = vpop.f32.mrb[0].mxu0
        %v875 = vadd.f32 %v743, %v874
        %876 = vmatprep.mubr.f32.mxu0 0.0
        %877 = vmatmul.mubr.f32.gmra.mrb[0].mxu0 %v780
        %v878 = vpop.f32.mrb[0].mxu0
        %v879 = vadd.f32 %v748, %v878
        %v880 = vpop.f32.mrb[0].mxu0
        %v881 = vadd.f32 %v748, %v880
        %882 = vmatprep.mubr.f32.mxu0 0.0
        %883 = vmatmul.mubr.f32.gmra.mrb[0].mxu0 %v783
        %v884 = vpop.f32.mrb[0].mxu0
        %v885 = vadd.f32 %v753, %v884
        %v886 = vpop.f32.mrb[0].mxu0
        %v887 = vadd.f32 %v753, %v886
        %888 = vmatprep.mubr.f32.mxu0 0.0
        %889 = vmatmul.mubr.f32.gmra.mrb[0].mxu0 %v786
        %v890 = vpop.f32.mrb[0].mxu0
        %v891 = vadd.f32 %v758, %v890
        %v892 = vpop.f32.mrb[0].mxu0
        %v893 = vadd.f32 %v758, %v892
        %894 = vmatprep.mubr.f32.mxu0 0.0
        %895 = vmatmul.mubr.f32.gmra.mrb[0].mxu0 %v789
        %v896 = vpop.f32.mrb[0].mxu0
        %v897 = vadd.f32 %v763, %v896
        %v898 = vpop.f32.mrb[0].mxu0
        %v899 = vadd.f32 %v763, %v898
        %900 = vmatprep.mubr.f32.mxu0 0.0
        %901 = vmatmul.mubr.f32.gmra.mrb[0].mxu0 %v792
        %v902 = vpop.f32.mrb[0].mxu0
        %v903 = vadd.f32 %v768, %v902
        %v904 = vpop.f32.mrb[0].mxu0
        %v905 = vadd.f32 %v768, %v904
        %906 = vdwg.mxu0
        %908 = vset.pattern.permute.xlu0 0
        %909 = vperm.xlu0 %908, %v722
        %v910 = vpop.permute.xlu0 %909
        %913 = vset.pattern.permute.xlu0 0
        %914 = vperm.xlu0 %913, %v723
        %v915 = vpop.permute.xlu0 %914
        %918 = vset.pattern.permute.xlu0 0
        %919 = vperm.xlu0 %918, %v724
        %v920 = vpop.permute.xlu0 %919
        %923 = vset.pattern.permute.xlu0 0
        %924 = vperm.xlu0 %923, %v725
        %v925 = vpop.permute.xlu0 %924
        %928 = vset.pattern.permute.xlu0 0
        %929 = vperm.xlu0 %928, %v726
        %v930 = vpop.permute.xlu0 %929
        %933 = vset.pattern.permute.xlu0 0
        %934 = vperm.xlu0 %933, %v727
        %v935 = vpop.permute.xlu0 %934
        %938 = vset.pattern.permute.xlu0 0
        %939 = vperm.xlu0 %938, %v728
        %v940 = vpop.permute.xlu0 %939
        %943 = vset.pattern.permute.xlu0 0
        %944 = vperm.xlu0 %943, %v729
        %v945 = vpop.permute.xlu0 %944
        %v948 = vsel %vm560, %v714, 0
        %v951 = vsel %vm560, %v715, 0
        %v954 = vsel %vm560, %v716, 0
        %v957 = vsel %vm560, %v717, 0
        %v960 = vsel %vm560, %v718, 0
        %v963 = vsel %vm560, %v719, 0
        %v966 = vsel %vm560, %v720, 0
        %v969 = vsel %vm560, %v721, 0
        %971 = vmatprep.subr.mxu0 %v863
        %972 = vmatpush1.msra.mxu0 %v861
        %973 = vmatprep.subr.mxu0 %v869
        %974 = vmatpush1.msra.mxu0 %v867
        %975 = vmatprep.subr.mxu0 %v875
        %976 = vmatpush1.msra.mxu0 %v873
        %977 = vmatprep.subr.mxu0 %v881
        %978 = vmatpush1.msra.mxu0 %v879
        %979 = vmatprep.subr.mxu0 0.0
        %980 = vmatpush1.msra.mxu0 0.0
        %981 = vmatprep.subr.mxu0 0.0
        %982 = vmatpush1.msra.mxu0 0.0
        %983 = vmatprep.subr.mxu0 0.0
        %984 = vmatpush1.msra.mxu0 0.0
        %985 = vmatprep.subr.mxu0 0.0
        %986 = vmatpush1.msra.mxu0 0.0
        %987 = vmatprep.subr.mxu0 0.0
        %988 = vmatpush1.msra.mxu0 0.0
        %989 = vmatprep.subr.mxu0 0.0
        %990 = vmatpush1.msra.mxu0 0.0
        %991 = vmatprep.subr.mxu0 0.0
        %992 = vmatpush1.msra.mxu0 0.0
        %993 = vmatprep.subr.mxu0 0.0
        %994 = vmatpush1.msra.mxu0 0.0
        %995 = vmatprep.subr.mxu0 0.0
        %996 = vmatpush1.msra.mxu0 0.0
        %997 = vmatprep.subr.mxu0 0.0
        %998 = vmatpush1.msra.mxu0 0.0
        %999 = vmatprep.subr.mxu0 0.0
        %1000 = vmatpush1.msra.mxu0 0.0
        %1001 = vmatprep.subr.mxu0 0.0
        %1002 = vmatpush1.msra.mxu0 0.0
        %1003 = vmatprep.subr.mxu0 0.0
        %1004 = vmatpush1.msra.mxu0 0.0
        %1005 = vmatprep.subr.mxu0 0.0
        %1006 = vmatpush1.msra.mxu0 0.0
        %1007 = vmatprep.subr.mxu0 0.0
        %1008 = vmatpush1.msra.mxu0 0.0
        %1009 = vmatprep.subr.mxu0 0.0
        %1010 = vmatpush1.msra.mxu0 0.0
        %1011 = vmatprep.subr.mxu0 0.0
        %1012 = vmatpush1.msra.mxu0 0.0
        %1013 = vmatprep.subr.mxu0 0.0
        %1014 = vmatpush1.msra.mxu0 0.0
        %1015 = vmatprep.subr.mxu0 0.0
        %1016 = vmatpush1.msra.mxu0 0.0
        %1017 = vmatprep.subr.mxu0 0.0
        %1018 = vmatpush1.msra.mxu0 0.0
        %1019 = vmatprep.subr.mxu0 0.0
        %1020 = vmatpush1.msra.mxu0 0.0
        %1021 = vmatprep.subr.mxu0 0.0
        %1022 = vmatpush1.msra.mxu0 0.0
        %1023 = vmatprep.subr.mxu0 0.0
        %1024 = vmatpush1.msra.mxu0 0.0
        %1025 = vmatprep.subr.mxu0 0.0
        %1026 = vmatpush1.msra.mxu0 0.0
        %1027 = vmatprep.subr.mxu0 0.0
        %1028 = vmatpush1.msra.mxu0 0.0
        %1029 = vmatprep.subr.mxu0 0.0
        %1030 = vmatpush1.msra.mxu0 0.0
        %1031 = vmatprep.subr.mxu0 0.0
        %1032 = vmatpush1.msra.mxu0 0.0
        %1033 = vmatprep.subr.mxu0 0.0
        %1034 = vmatpush1.msra.mxu0 0.0
        %1035 = vmatprep.mubr.f32.mxu0 0.0
        %1036 = vmatmul.mubr.f32.gmra.mrb[0].mxu0 %v948
        %v1037 = vpop.f32.mrb[0].mxu0
        %v1038 = vadd.f32 %v910, %v1037
        %v1039 = vpop.f32.mrb[0].mxu0
        %v1040 = vadd.f32 %v910, %v1039
        %1041 = vmatprep.mubr.f32.mxu0 0.0
        %1042 = vmatmul.mubr.f32.gmra.mrb[0].mxu0 %v951
        %v1043 = vpop.f32.mrb[0].mxu0
        %v1044 = vadd.f32 %v915, %v1043
        %v1045 = vpop.f32.mrb[0].mxu0
        %v1046 = vadd.f32 %v915, %v1045
        %1047 = vmatprep.mubr.f32.mxu0 0.0
        %1048 = vmatmul.mubr.f32.gmra.mrb[0].mxu0 %v954
        %v1049 = vpop.f32.mrb[0].mxu0
        %v1050 = vadd.f32 %v920, %v1049
        %v1051 = vpop.f32.mrb[0].mxu0
        %v1052 = vadd.f32 %v920, %v1051
        %1053 = vmatprep.mubr.f32.mxu0 0.0
        %1054 = vmatmul.mubr.f32.gmra.mrb[0].mxu0 %v957
        %v1055 = vpop.f32.mrb[0].mxu0
        %v1056 = vadd.f32 %v925, %v1055
        %v1057 = vpop.f32.mrb[0].mxu0
        %v1058 = vadd.f32 %v925, %v1057
        %1059 = vmatprep.mubr.f32.mxu0 0.0
        %1060 = vmatmul.mubr.f32.gmra.mrb[0].mxu0 %v960
        %v1061 = vpop.f32.mrb[0].mxu0
        %v1062 = vadd.f32 %v930, %v1061
        %v1063 = vpop.f32.mrb[0].mxu0
        %v1064 = vadd.f32 %v930, %v1063
        %1065 = vmatprep.mubr.f32.mxu0 0.0
        %1066 = vmatmul.mubr.f32.gmra.mrb[0].mxu0 %v963
        %v1067 = vpop.f32.mrb[0].mxu0
        %v1068 = vadd.f32 %v935, %v1067
        %v1069 = vpop.f32.mrb[0].mxu0
        %v1070 = vadd.f32 %v935, %v1069
        %1071 = vmatprep.mubr.f32.mxu0 0.0
        %1072 = vmatmul.mubr.f32.gmra.mrb[0].mxu0 %v966
        %v1073 = vpop.f32.mrb[0].mxu0
        %v1074 = vadd.f32 %v940, %v1073
        %v1075 = vpop.f32.mrb[0].mxu0
        %v1076 = vadd.f32 %v940, %v1075
        %1077 = vmatprep.mubr.f32.mxu0 0.0
        %1078 = vmatmul.mubr.f32.gmra.mrb[0].mxu0 %v969
        %v1079 = vpop.f32.mrb[0].mxu0
        %v1080 = vadd.f32 %v945, %v1079
        %v1081 = vpop.f32.mrb[0].mxu0
        %v1082 = vadd.f32 %v945, %v1081
        %1083 = vdwg.mxu0
        %1084 = vst [vmem:[%s350] sm:$0xff] %v1038
        %1085 = vst [vmem:[%s350 + $0x8] sm:$0xff] %v1040
        %1086 = vst [vmem:[%s350 + $0x10] sm:$0xff] %v1044
        %1087 = vst [vmem:[%s350 + $0x18] sm:$0xff] %v1046
        %1088 = vst [vmem:[%s350 + $0x20] sm:$0xff] %v1050
        %1089 = vst [vmem:[%s350 + $0x28] sm:$0xff] %v1052
        %1090 = vst [vmem:[%s350 + $0x30] sm:$0xff] %v1056
        %1091 = vst [vmem:[%s350 + $0x38] sm:$0xff] %v1058
        %s1092 = scalar_lea.vmem %s350, 64 [#allocation2]
        %1093 = vst [vmem:[%s1092] sm:$0xff] %v1062
        %1094 = vst [vmem:[%s1092 + $0x8] sm:$0xff] %v1064
        %1095 = vst [vmem:[%s1092 + $0x10] sm:$0xff] %v1068
        %1096 = vst [vmem:[%s1092 + $0x18] sm:$0xff] %v1070
        %1097 = vst [vmem:[%s1092 + $0x20] sm:$0xff] %v1074
        %1098 = vst [vmem:[%s1092 + $0x28] sm:$0xff] %v1076
        %1099 = vst [vmem:[%s1092 + $0x30] sm:$0xff] %v1080
        %1100 = vst [vmem:[%s1092 + $0x38] sm:$0xff] %v1082
        %1101 = vmatprep.subr.mxu0 %v887
        %1102 = vmatpush1.msra.mxu0 %v885
        %1103 = vmatprep.subr.mxu0 %v893
        %1104 = vmatpush1.msra.mxu0 %v891
        %1105 = vmatprep.subr.mxu0 %v899
        %1106 = vmatpush1.msra.mxu0 %v897
        %1107 = vmatprep.subr.mxu0 %v905
        %1108 = vmatpush1.msra.mxu0 %v903
        %1109 = vmatprep.subr.mxu0 0.0
        %1110 = vmatpush1.msra.mxu0 0.0
        %1111 = vmatprep.subr.mxu0 0.0
        %1112 = vmatpush1.msra.mxu0 0.0
        %1113 = vmatprep.subr.mxu0 0.0
        %1114 = vmatpush1.msra.mxu0 0.0
        %1115 = vmatprep.subr.mxu0 0.0
        %1116 = vmatpush1.msra.mxu0 0.0
        %1117 = vmatprep.subr.mxu0 0.0
        %1118 = vmatpush1.msra.mxu0 0.0
        %1119 = vmatprep.subr.mxu0 0.0
        %1120 = vmatpush1.msra.mxu0 0.0
        %1121 = vmatprep.subr.mxu0 0.0
        %1122 = vmatpush1.msra.mxu0 0.0
        %1123 = vmatprep.subr.mxu0 0.0
        %1124 = vmatpush1.msra.mxu0 0.0
        %1125 = vmatprep.subr.mxu0 0.0
        %1126 = vmatpush1.msra.mxu0 0.0
        %1127 = vmatprep.subr.mxu0 0.0
        %1128 = vmatpush1.msra.mxu0 0.0
        %1129 = vmatprep.subr.mxu0 0.0
        %1130 = vmatpush1.msra.mxu0 0.0
        %1131 = vmatprep.subr.mxu0 0.0
        %1132 = vmatpush1.msra.mxu0 0.0
        %1133 = vmatprep.subr.mxu0 0.0
        %1134 = vmatpush1.msra.mxu0 0.0
        %1135 = vmatprep.subr.mxu0 0.0
        %1136 = vmatpush1.msra.mxu0 0.0
        %1137 = vmatprep.subr.mxu0 0.0
        %1138 = vmatpush1.msra.mxu0 0.0
        %1139 = vmatprep.subr.mxu0 0.0
        %1140 = vmatpush1.msra.mxu0 0.0
        %1141 = vmatprep.subr.mxu0 0.0
        %1142 = vmatpush1.msra.mxu0 0.0
        %1143 = vmatprep.subr.mxu0 0.0
        %1144 = vmatpush1.msra.mxu0 0.0
        %1145 = vmatprep.subr.mxu0 0.0
        %1146 = vmatpush1.msra.mxu0 0.0
        %1147 = vmatprep.subr.mxu0 0.0
        %1148 = vmatpush1.msra.mxu0 0.0
        %1149 = vmatprep.subr.mxu0 0.0
        %1150 = vmatpush1.msra.mxu0 0.0
        %1151 = vmatprep.subr.mxu0 0.0
        %1152 = vmatpush1.msra.mxu0 0.0
        %1153 = vmatprep.subr.mxu0 0.0
        %1154 = vmatpush1.msra.mxu0 0.0
        %1155 = vmatprep.subr.mxu0 0.0
        %1156 = vmatpush1.msra.mxu0 0.0
        %1157 = vmatprep.subr.mxu0 0.0
        %1158 = vmatpush1.msra.mxu0 0.0
        %1159 = vmatprep.subr.mxu0 0.0
        %1160 = vmatpush1.msra.mxu0 0.0
        %1161 = vmatprep.subr.mxu0 0.0
        %1162 = vmatpush1.msra.mxu0 0.0
        %1163 = vmatprep.subr.mxu0 0.0
        %1164 = vmatpush1.msra.mxu0 0.0
        %1165 = vmatprep.mubr.f32.mxu0 0.0
        %1166 = vmatmul.mubr.f32.gmra.mrb[0].mxu0 %v948
        %v1167 = vpop.f32.mrb[0].mxu0
        %v1168 = vadd.f32 %v910, %v1167
        %v1169 = vpop.f32.mrb[0].mxu0
        %v1170 = vadd.f32 %v910, %v1169
        %1171 = vmatprep.mubr.f32.mxu0 0.0
        %1172 = vmatmul.mubr.f32.gmra.mrb[0].mxu0 %v951
        %v1173 = vpop.f32.mrb[0].mxu0
        %v1174 = vadd.f32 %v915, %v1173
        %v1175 = vpop.f32.mrb[0].mxu0
        %v1176 = vadd.f32 %v915, %v1175
        %1177 = vmatprep.mubr.f32.mxu0 0.0
        %1178 = vmatmul.mubr.f32.gmra.mrb[0].mxu0 %v954
        %v1179 = vpop.f32.mrb[0].mxu0
        %v1180 = vadd.f32 %v920, %v1179
        %v1181 = vpop.f32.mrb[0].mxu0
        %v1182 = vadd.f32 %v920, %v1181
        %1183 = vmatprep.mubr.f32.mxu0 0.0
        %1184 = vmatmul.mubr.f32.gmra.mrb[0].mxu0 %v957
        %v1185 = vpop.f32.mrb[0].mxu0
        %v1186 = vadd.f32 %v925, %v1185
        %v1187 = vpop.f32.mrb[0].mxu0
        %v1188 = vadd.f32 %v925, %v1187
        %1189 = vmatprep.mubr.f32.mxu0 0.0
        %1190 = vmatmul.mubr.f32.gmra.mrb[0].mxu0 %v960
        %v1191 = vpop.f32.mrb[0].mxu0
        %v1192 = vadd.f32 %v930, %v1191
        %v1193 = vpop.f32.mrb[0].mxu0
        %v1194 = vadd.f32 %v930, %v1193
        %1195 = vmatprep.mubr.f32.mxu0 0.0
        %1196 = vmatmul.mubr.f32.gmra.mrb[0].mxu0 %v963
        %v1197 = vpop.f32.mrb[0].mxu0
        %v1198 = vadd.f32 %v935, %v1197
        %v1199 = vpop.f32.mrb[0].mxu0
        %v1200 = vadd.f32 %v935, %v1199
        %1201 = vmatprep.mubr.f32.mxu0 0.0
        %1202 = vmatmul.mubr.f32.gmra.mrb[0].mxu0 %v966
        %v1203 = vpop.f32.mrb[0].mxu0
        %v1204 = vadd.f32 %v940, %v1203
        %v1205 = vpop.f32.mrb[0].mxu0
        %v1206 = vadd.f32 %v940, %v1205
        %1207 = vmatprep.mubr.f32.mxu0 0.0
        %1208 = vmatmul.mubr.f32.gmra.mrb[0].mxu0 %v969
        %v1209 = vpop.f32.mrb[0].mxu0
        %v1210 = vadd.f32 %v945, %v1209
        %v1211 = vpop.f32.mrb[0].mxu0
        %v1212 = vadd.f32 %v945, %v1211
        %1213 = vdwg.mxu0
        %s1214 = scalar_lea.vmem %s350, 128 [#allocation2]
        %1215 = vst [vmem:[%s1214] sm:$0xff] %v1168
        %1216 = vst [vmem:[%s1214 + $0x8] sm:$0xff] %v1170
        %1217 = vst [vmem:[%s1214 + $0x10] sm:$0xff] %v1174
        %1218 = vst [vmem:[%s1214 + $0x18] sm:$0xff] %v1176
        %1219 = vst [vmem:[%s1214 + $0x20] sm:$0xff] %v1180
        %1220 = vst [vmem:[%s1214 + $0x28] sm:$0xff] %v1182
        %1221 = vst [vmem:[%s1214 + $0x30] sm:$0xff] %v1186
        %1222 = vst [vmem:[%s1214 + $0x38] sm:$0xff] %v1188
        %s1223 = scalar_lea.vmem %s350, 192 [#allocation2]
        %1224 = vst [vmem:[%s1223] sm:$0xff] %v1192
        %1225 = vst [vmem:[%s1223 + $0x8] sm:$0xff] %v1194
        %1226 = vst [vmem:[%s1223 + $0x10] sm:$0xff] %v1198
        %1227 = vst [vmem:[%s1223 + $0x18] sm:$0xff] %v1200
        %1228 = vst [vmem:[%s1223 + $0x20] sm:$0xff] %v1204
        %1229 = vst [vmem:[%s1223 + $0x28] sm:$0xff] %v1206
        %1230 = vst [vmem:[%s1223 + $0x30] sm:$0xff] %v1210
        %1231 = vst [vmem:[%s1223 + $0x38] sm:$0xff] %v1212
        %1232 = vmatprep.subr.mxu0 %v678
        %1233 = vmatpush1.msra.mxu0 %v676
        %1234 = vmatprep.subr.mxu0 %v684
        %1235 = vmatpush1.msra.mxu0 %v682
        %1236 = vmatprep.subr.mxu0 %v690
        %1237 = vmatpush1.msra.mxu0 %v688
        %1238 = vmatprep.subr.mxu0 %v696
        %1239 = vmatpush1.msra.mxu0 %v694
        %1240 = vmatprep.subr.mxu0 0.0
        %1241 = vmatpush1.msra.mxu0 0.0
        %1242 = vmatprep.subr.mxu0 0.0
        %1243 = vmatpush1.msra.mxu0 0.0
        %1244 = vmatprep.subr.mxu0 0.0
        %1245 = vmatpush1.msra.mxu0 0.0
        %1246 = vmatprep.subr.mxu0 0.0
        %1247 = vmatpush1.msra.mxu0 0.0
        %1248 = vmatprep.subr.mxu0 0.0
        %1249 = vmatpush1.msra.mxu0 0.0
        %1250 = vmatprep.subr.mxu0 0.0
        %1251 = vmatpush1.msra.mxu0 0.0
        %1252 = vmatprep.subr.mxu0 0.0
        %1253 = vmatpush1.msra.mxu0 0.0
        %1254 = vmatprep.subr.mxu0 0.0
        %1255 = vmatpush1.msra.mxu0 0.0
        %1256 = vmatprep.subr.mxu0 0.0
        %1257 = vmatpush1.msra.mxu0 0.0
        %1258 = vmatprep.subr.mxu0 0.0
        %1259 = vmatpush1.msra.mxu0 0.0
        %1260 = vmatprep.subr.mxu0 0.0
        %1261 = vmatpush1.msra.mxu0 0.0
        %1262 = vmatprep.subr.mxu0 0.0
        %1263 = vmatpush1.msra.mxu0 0.0
        %1264 = vmatprep.subr.mxu0 0.0
        %1265 = vmatpush1.msra.mxu0 0.0
        %1266 = vmatprep.subr.mxu0 0.0
        %1267 = vmatpush1.msra.mxu0 0.0
        %1268 = vmatprep.subr.mxu0 0.0
        %1269 = vmatpush1.msra.mxu0 0.0
        %1270 = vmatprep.subr.mxu0 0.0
        %1271 = vmatpush1.msra.mxu0 0.0
        %1272 = vmatprep.subr.mxu0 0.0
        %1273 = vmatpush1.msra.mxu0 0.0
        %1274 = vmatprep.subr.mxu0 0.0
        %1275 = vmatpush1.msra.mxu0 0.0
        %1276 = vmatprep.subr.mxu0 0.0
        %1277 = vmatpush1.msra.mxu0 0.0
        %1278 = vmatprep.subr.mxu0 0.0
        %1279 = vmatpush1.msra.mxu0 0.0
        %1280 = vmatprep.subr.mxu0 0.0
        %1281 = vmatpush1.msra.mxu0 0.0
        %1282 = vmatprep.subr.mxu0 0.0
        %1283 = vmatpush1.msra.mxu0 0.0
        %1284 = vmatprep.subr.mxu0 0.0
        %1285 = vmatpush1.msra.mxu0 0.0
        %1286 = vmatprep.subr.mxu0 0.0
        %1287 = vmatpush1.msra.mxu0 0.0
        %1288 = vmatprep.subr.mxu0 0.0
        %1289 = vmatpush1.msra.mxu0 0.0
        %1290 = vmatprep.subr.mxu0 0.0
        %1291 = vmatpush1.msra.mxu0 0.0
        %1292 = vmatprep.subr.mxu0 0.0
        %1293 = vmatpush1.msra.mxu0 0.0
        %1294 = vmatprep.subr.mxu0 0.0
        %1295 = vmatpush1.msra.mxu0 0.0
        %1296 = vmatprep.mubr.f32.mxu0 0.0
        %1297 = vmatmul.mubr.f32.gmra.mrb[0].mxu0 %v771
        %v1298 = vpop.f32.mrb[0].mxu0
        %v1299 = vadd.f32 %v733, %v1298
        %v1300 = vpop.f32.mrb[0].mxu0
        %v1301 = vadd.f32 %v733, %v1300
        %1302 = vmatprep.mubr.f32.mxu0 0.0
        %1303 = vmatmul.mubr.f32.gmra.mrb[0].mxu0 %v774
        %v1304 = vpop.f32.mrb[0].mxu0
        %v1305 = vadd.f32 %v738, %v1304
        %v1306 = vpop.f32.mrb[0].mxu0
        %v1307 = vadd.f32 %v738, %v1306
        %1308 = vmatprep.mubr.f32.mxu0 0.0
        %1309 = vmatmul.mubr.f32.gmra.mrb[0].mxu0 %v777
        %v1310 = vpop.f32.mrb[0].mxu0
        %v1311 = vadd.f32 %v743, %v1310
        %v1312 = vpop.f32.mrb[0].mxu0
        %v1313 = vadd.f32 %v743, %v1312
        %1314 = vmatprep.mubr.f32.mxu0 0.0
        %1315 = vmatmul.mubr.f32.gmra.mrb[0].mxu0 %v780
        %v1316 = vpop.f32.mrb[0].mxu0
        %v1317 = vadd.f32 %v748, %v1316
        %v1318 = vpop.f32.mrb[0].mxu0
        %v1319 = vadd.f32 %v748, %v1318
        %1320 = vmatprep.mubr.f32.mxu0 0.0
        %1321 = vmatmul.mubr.f32.gmra.mrb[0].mxu0 %v783
        %v1322 = vpop.f32.mrb[0].mxu0
        %v1323 = vadd.f32 %v753, %v1322
        %v1324 = vpop.f32.mrb[0].mxu0
        %v1325 = vadd.f32 %v753, %v1324
        %1326 = vmatprep.mubr.f32.mxu0 0.0
        %1327 = vmatmul.mubr.f32.gmra.mrb[0].mxu0 %v786
        %v1328 = vpop.f32.mrb[0].mxu0
        %v1329 = vadd.f32 %v758, %v1328
        %v1330 = vpop.f32.mrb[0].mxu0
        %v1331 = vadd.f32 %v758, %v1330
        %1332 = vmatprep.mubr.f32.mxu0 0.0
        %1333 = vmatmul.mubr.f32.gmra.mrb[0].mxu0 %v789
        %v1334 = vpop.f32.mrb[0].mxu0
        %v1335 = vadd.f32 %v763, %v1334
        %v1336 = vpop.f32.mrb[0].mxu0
        %v1337 = vadd.f32 %v763, %v1336
        %1338 = vmatprep.mubr.f32.mxu0 0.0
        %1339 = vmatmul.mubr.f32.gmra.mrb[0].mxu0 %v792
        %v1340 = vpop.f32.mrb[0].mxu0
        %v1341 = vadd.f32 %v768, %v1340
        %v1342 = vpop.f32.mrb[0].mxu0
        %v1343 = vadd.f32 %v768, %v1342
        %1344 = vdwg.mxu0
        %1345 = vmatprep.subr.mxu0 %v1301
        %1346 = vmatpush1.msra.mxu0 %v1299
        %1347 = vmatprep.subr.mxu0 %v1307
        %1348 = vmatpush1.msra.mxu0 %v1305
        %1349 = vmatprep.subr.mxu0 %v1313
        %1350 = vmatpush1.msra.mxu0 %v1311
        %1351 = vmatprep.subr.mxu0 %v1319
        %1352 = vmatpush1.msra.mxu0 %v1317
        %1353 = vmatprep.subr.mxu0 0.0
        %1354 = vmatpush1.msra.mxu0 0.0
        %1355 = vmatprep.subr.mxu0 0.0
        %1356 = vmatpush1.msra.mxu0 0.0
        %1357 = vmatprep.subr.mxu0 0.0
        %1358 = vmatpush1.msra.mxu0 0.0
        %1359 = vmatprep.subr.mxu0 0.0
        %1360 = vmatpush1.msra.mxu0 0.0
        %1361 = vmatprep.subr.mxu0 0.0
        %1362 = vmatpush1.msra.mxu0 0.0
        %1363 = vmatprep.subr.mxu0 0.0
        %1364 = vmatpush1.msra.mxu0 0.0
        %1365 = vmatprep.subr.mxu0 0.0
        %1366 = vmatpush1.msra.mxu0 0.0
        %1367 = vmatprep.subr.mxu0 0.0
        %1368 = vmatpush1.msra.mxu0 0.0
        %1369 = vmatprep.subr.mxu0 0.0
        %1370 = vmatpush1.msra.mxu0 0.0
        %1371 = vmatprep.subr.mxu0 0.0
        %1372 = vmatpush1.msra.mxu0 0.0
        %1373 = vmatprep.subr.mxu0 0.0
        %1374 = vmatpush1.msra.mxu0 0.0
        %1375 = vmatprep.subr.mxu0 0.0
        %1376 = vmatpush1.msra.mxu0 0.0
        %1377 = vmatprep.subr.mxu0 0.0
        %1378 = vmatpush1.msra.mxu0 0.0
        %1379 = vmatprep.subr.mxu0 0.0
        %1380 = vmatpush1.msra.mxu0 0.0
        %1381 = vmatprep.subr.mxu0 0.0
        %1382 = vmatpush1.msra.mxu0 0.0
        %1383 = vmatprep.subr.mxu0 0.0
        %1384 = vmatpush1.msra.mxu0 0.0
        %1385 = vmatprep.subr.mxu0 0.0
        %1386 = vmatpush1.msra.mxu0 0.0
        %1387 = vmatprep.subr.mxu0 0.0
        %1388 = vmatpush1.msra.mxu0 0.0
        %1389 = vmatprep.subr.mxu0 0.0
        %1390 = vmatpush1.msra.mxu0 0.0
        %1391 = vmatprep.subr.mxu0 0.0
        %1392 = vmatpush1.msra.mxu0 0.0
        %1393 = vmatprep.subr.mxu0 0.0
        %1394 = vmatpush1.msra.mxu0 0.0
        %1395 = vmatprep.subr.mxu0 0.0
        %1396 = vmatpush1.msra.mxu0 0.0
        %1397 = vmatprep.subr.mxu0 0.0
        %1398 = vmatpush1.msra.mxu0 0.0
        %1399 = vmatprep.subr.mxu0 0.0
        %1400 = vmatpush1.msra.mxu0 0.0
        %1401 = vmatprep.subr.mxu0 0.0
        %1402 = vmatpush1.msra.mxu0 0.0
        %1403 = vmatprep.subr.mxu0 0.0
        %1404 = vmatpush1.msra.mxu0 0.0
        %1405 = vmatprep.subr.mxu0 0.0
        %1406 = vmatpush1.msra.mxu0 0.0
        %1407 = vmatprep.subr.mxu0 0.0
        %1408 = vmatpush1.msra.mxu0 0.0
        %1409 = vmatprep.mubr.f32.mxu0 0.0
        %1410 = vmatmul.mubr.f32.gmra.mrb[0].mxu0 %v948
        %v1411 = vpop.f32.mrb[0].mxu0
        %v1412 = vadd.f32 %v910, %v1411
        %v1413 = vpop.f32.mrb[0].mxu0
        %v1414 = vadd.f32 %v910, %v1413
        %1415 = vmatprep.mubr.f32.mxu0 0.0
        %1416 = vmatmul.mubr.f32.gmra.mrb[0].mxu0 %v951
        %v1417 = vpop.f32.mrb[0].mxu0
        %v1418 = vadd.f32 %v915, %v1417
        %v1419 = vpop.f32.mrb[0].mxu0
        %v1420 = vadd.f32 %v915, %v1419
        %1421 = vmatprep.mubr.f32.mxu0 0.0
        %1422 = vmatmul.mubr.f32.gmra.mrb[0].mxu0 %v954
        %v1423 = vpop.f32.mrb[0].mxu0
        %v1424 = vadd.f32 %v920, %v1423
        %v1425 = vpop.f32.mrb[0].mxu0
        %v1426 = vadd.f32 %v920, %v1425
        %1427 = vmatprep.mubr.f32.mxu0 0.0
        %1428 = vmatmul.mubr.f32.gmra.mrb[0].mxu0 %v957
        %v1429 = vpop.f32.mrb[0].mxu0
        %v1430 = vadd.f32 %v925, %v1429
        %v1431 = vpop.f32.mrb[0].mxu0
        %v1432 = vadd.f32 %v925, %v1431
        %1433 = vmatprep.mubr.f32.mxu0 0.0
        %1434 = vmatmul.mubr.f32.gmra.mrb[0].mxu0 %v960
        %v1435 = vpop.f32.mrb[0].mxu0
        %v1436 = vadd.f32 %v930, %v1435
        %v1437 = vpop.f32.mrb[0].mxu0
        %v1438 = vadd.f32 %v930, %v1437
        %1439 = vmatprep.mubr.f32.mxu0 0.0
        %1440 = vmatmul.mubr.f32.gmra.mrb[0].mxu0 %v963
        %v1441 = vpop.f32.mrb[0].mxu0
        %v1442 = vadd.f32 %v935, %v1441
        %v1443 = vpop.f32.mrb[0].mxu0
        %v1444 = vadd.f32 %v935, %v1443
        %1445 = vmatprep.mubr.f32.mxu0 0.0
        %1446 = vmatmul.mubr.f32.gmra.mrb[0].mxu0 %v966
        %v1447 = vpop.f32.mrb[0].mxu0
        %v1448 = vadd.f32 %v940, %v1447
        %v1449 = vpop.f32.mrb[0].mxu0
        %v1450 = vadd.f32 %v940, %v1449
        %1451 = vmatprep.mubr.f32.mxu0 0.0
        %1452 = vmatmul.mubr.f32.gmra.mrb[0].mxu0 %v969
        %v1453 = vpop.f32.mrb[0].mxu0
        %v1454 = vadd.f32 %v945, %v1453
        %v1455 = vpop.f32.mrb[0].mxu0
        %v1456 = vadd.f32 %v945, %v1455
        %1457 = vdwg.mxu0
        %s1458 = scalar_lea.vmem %s350, 256 [#allocation2]
        %1459 = vst [vmem:[%s1458] sm:$0xff] %v1412
        %1460 = vst [vmem:[%s1458 + $0x8] sm:$0xff] %v1414
        %1461 = vst [vmem:[%s1458 + $0x10] sm:$0xff] %v1418
        %1462 = vst [vmem:[%s1458 + $0x18] sm:$0xff] %v1420
        %1463 = vst [vmem:[%s1458 + $0x20] sm:$0xff] %v1424
        %1464 = vst [vmem:[%s1458 + $0x28] sm:$0xff] %v1426
        %1465 = vst [vmem:[%s1458 + $0x30] sm:$0xff] %v1430
        %1466 = vst [vmem:[%s1458 + $0x38] sm:$0xff] %v1432
        %s1467 = scalar_lea.vmem %s350, 320 [#allocation2]
        %1468 = vst [vmem:[%s1467] sm:$0xff] %v1436
        %1469 = vst [vmem:[%s1467 + $0x8] sm:$0xff] %v1438
        %1470 = vst [vmem:[%s1467 + $0x10] sm:$0xff] %v1442
        %1471 = vst [vmem:[%s1467 + $0x18] sm:$0xff] %v1444
        %1472 = vst [vmem:[%s1467 + $0x20] sm:$0xff] %v1448
        %1473 = vst [vmem:[%s1467 + $0x28] sm:$0xff] %v1450
        %1474 = vst [vmem:[%s1467 + $0x30] sm:$0xff] %v1454
        %1475 = vst [vmem:[%s1467 + $0x38] sm:$0xff] %v1456
        %1476 = vmatprep.subr.mxu0 %v1325
        %1477 = vmatpush1.msra.mxu0 %v1323
        %1478 = vmatprep.subr.mxu0 %v1331
        %1479 = vmatpush1.msra.mxu0 %v1329
        %1480 = vmatprep.subr.mxu0 %v1337
        %1481 = vmatpush1.msra.mxu0 %v1335
        %1482 = vmatprep.subr.mxu0 %v1343
        %1483 = vmatpush1.msra.mxu0 %v1341
        %1484 = vmatprep.subr.mxu0 0.0
        %1485 = vmatpush1.msra.mxu0 0.0
        %1486 = vmatprep.subr.mxu0 0.0
        %1487 = vmatpush1.msra.mxu0 0.0
        %1488 = vmatprep.subr.mxu0 0.0
        %1489 = vmatpush1.msra.mxu0 0.0
        %1490 = vmatprep.subr.mxu0 0.0
        %1491 = vmatpush1.msra.mxu0 0.0
        %1492 = vmatprep.subr.mxu0 0.0
        %1493 = vmatpush1.msra.mxu0 0.0
        %1494 = vmatprep.subr.mxu0 0.0
        %1495 = vmatpush1.msra.mxu0 0.0
        %1496 = vmatprep.subr.mxu0 0.0
        %1497 = vmatpush1.msra.mxu0 0.0
        %1498 = vmatprep.subr.mxu0 0.0
        %1499 = vmatpush1.msra.mxu0 0.0
        %1500 = vmatprep.subr.mxu0 0.0
        %1501 = vmatpush1.msra.mxu0 0.0
        %1502 = vmatprep.subr.mxu0 0.0
        %1503 = vmatpush1.msra.mxu0 0.0
        %1504 = vmatprep.subr.mxu0 0.0
        %1505 = vmatpush1.msra.mxu0 0.0
        %1506 = vmatprep.subr.mxu0 0.0
        %1507 = vmatpush1.msra.mxu0 0.0
        %1508 = vmatprep.subr.mxu0 0.0
        %1509 = vmatpush1.msra.mxu0 0.0
        %1510 = vmatprep.subr.mxu0 0.0
        %1511 = vmatpush1.msra.mxu0 0.0
        %1512 = vmatprep.subr.mxu0 0.0
        %1513 = vmatpush1.msra.mxu0 0.0
        %1514 = vmatprep.subr.mxu0 0.0
        %1515 = vmatpush1.msra.mxu0 0.0
        %1516 = vmatprep.subr.mxu0 0.0
        %1517 = vmatpush1.msra.mxu0 0.0
        %1518 = vmatprep.subr.mxu0 0.0
        %1519 = vmatpush1.msra.mxu0 0.0
        %1520 = vmatprep.subr.mxu0 0.0
        %1521 = vmatpush1.msra.mxu0 0.0
        %1522 = vmatprep.subr.mxu0 0.0
        %1523 = vmatpush1.msra.mxu0 0.0
        %1524 = vmatprep.subr.mxu0 0.0
        %1525 = vmatpush1.msra.mxu0 0.0
        %1526 = vmatprep.subr.mxu0 0.0
        %1527 = vmatpush1.msra.mxu0 0.0
        %1528 = vmatprep.subr.mxu0 0.0
        %1529 = vmatpush1.msra.mxu0 0.0
        %1530 = vmatprep.subr.mxu0 0.0
        %1531 = vmatpush1.msra.mxu0 0.0
        %1532 = vmatprep.subr.mxu0 0.0
        %1533 = vmatpush1.msra.mxu0 0.0
        %1534 = vmatprep.subr.mxu0 0.0
        %1535 = vmatpush1.msra.mxu0 0.0
        %1536 = vmatprep.subr.mxu0 0.0
        %1537 = vmatpush1.msra.mxu0 0.0
        %1538 = vmatprep.subr.mxu0 0.0
        %1539 = vmatpush1.msra.mxu0 0.0
        %1540 = vmatprep.mubr.f32.mxu0 0.0
        %1541 = vmatmul.mubr.f32.gmra.mrb[0].mxu0 %v948
        %v1542 = vpop.f32.mrb[0].mxu0
        %v1543 = vadd.f32 %v910, %v1542
        %v1544 = vpop.f32.mrb[0].mxu0
        %v1545 = vadd.f32 %v910, %v1544
        %1546 = vmatprep.mubr.f32.mxu0 0.0
        %1547 = vmatmul.mubr.f32.gmra.mrb[0].mxu0 %v951
        %v1548 = vpop.f32.mrb[0].mxu0
        %v1549 = vadd.f32 %v915, %v1548
        %v1550 = vpop.f32.mrb[0].mxu0
        %v1551 = vadd.f32 %v915, %v1550
        %1552 = vmatprep.mubr.f32.mxu0 0.0
        %1553 = vmatmul.mubr.f32.gmra.mrb[0].mxu0 %v954
        %v1554 = vpop.f32.mrb[0].mxu0
        %v1555 = vadd.f32 %v920, %v1554
        %v1556 = vpop.f32.mrb[0].mxu0
        %v1557 = vadd.f32 %v920, %v1556
        %1558 = vmatprep.mubr.f32.mxu0 0.0
        %1559 = vmatmul.mubr.f32.gmra.mrb[0].mxu0 %v957
        %v1560 = vpop.f32.mrb[0].mxu0
        %v1561 = vadd.f32 %v925, %v1560
        %v1562 = vpop.f32.mrb[0].mxu0
        %v1563 = vadd.f32 %v925, %v1562
        %1564 = vmatprep.mubr.f32.mxu0 0.0
        %1565 = vmatmul.mubr.f32.gmra.mrb[0].mxu0 %v960
        %v1566 = vpop.f32.mrb[0].mxu0
        %v1567 = vadd.f32 %v930, %v1566
        %v1568 = vpop.f32.mrb[0].mxu0
        %v1569 = vadd.f32 %v930, %v1568
        %1570 = vmatprep.mubr.f32.mxu0 0.0
        %1571 = vmatmul.mubr.f32.gmra.mrb[0].mxu0 %v963
        %v1572 = vpop.f32.mrb[0].mxu0
        %v1573 = vadd.f32 %v935, %v1572
        %v1574 = vpop.f32.mrb[0].mxu0
        %v1575 = vadd.f32 %v935, %v1574
        %1576 = vmatprep.mubr.f32.mxu0 0.0
        %1577 = vmatmul.mubr.f32.gmra.mrb[0].mxu0 %v966
        %v1578 = vpop.f32.mrb[0].mxu0
        %v1579 = vadd.f32 %v940, %v1578
        %v1580 = vpop.f32.mrb[0].mxu0
        %v1581 = vadd.f32 %v940, %v1580
        %1582 = vmatprep.mubr.f32.mxu0 0.0
        %1583 = vmatmul.mubr.f32.gmra.mrb[0].mxu0 %v969
        %v1584 = vpop.f32.mrb[0].mxu0
        %v1585 = vadd.f32 %v945, %v1584
        %v1586 = vpop.f32.mrb[0].mxu0
        %v1587 = vadd.f32 %v945, %v1586
        %1588 = vdwg.mxu0
        %s1589 = scalar_lea.vmem %s350, 384 [#allocation2]
        %1590 = vst [vmem:[%s1589] sm:$0xff] %v1543
        %1591 = vst [vmem:[%s1589 + $0x8] sm:$0xff] %v1545
        %1592 = vst [vmem:[%s1589 + $0x10] sm:$0xff] %v1549
        %1593 = vst [vmem:[%s1589 + $0x18] sm:$0xff] %v1551
        %1594 = vst [vmem:[%s1589 + $0x20] sm:$0xff] %v1555
        %1595 = vst [vmem:[%s1589 + $0x28] sm:$0xff] %v1557
        %1596 = vst [vmem:[%s1589 + $0x30] sm:$0xff] %v1561
        %1597 = vst [vmem:[%s1589 + $0x38] sm:$0xff] %v1563
        %s1598 = scalar_lea.vmem %s350, 448 [#allocation2]
        %1599 = vst [vmem:[%s1598] sm:$0xff] %v1567
        %1600 = vst [vmem:[%s1598 + $0x8] sm:$0xff] %v1569
        %1601 = vst [vmem:[%s1598 + $0x10] sm:$0xff] %v1573
        %1602 = vst [vmem:[%s1598 + $0x18] sm:$0xff] %v1575
        %1603 = vst [vmem:[%s1598 + $0x20] sm:$0xff] %v1579
        %1604 = vst [vmem:[%s1598 + $0x28] sm:$0xff] %v1581
        %1605 = vst [vmem:[%s1598 + $0x30] sm:$0xff] %v1585
        %1606 = vst [vmem:[%s1598 + $0x38] sm:$0xff] %v1587
        %s1607 = sand.u32 %s241, 1
        %s1608 = scalar_lea.sflag [#allocation3], %s1607
        %s1609 = sand.u32 %s241, 1
        %s1610 = smul.addr %s1609, 512
        %s1611 = scalar_lea.vmem [#allocation2], %s1610
        // Predicated region
        $region57: #{tpu_custom_call.1} parent=55 // pred_check
          %p1612 = pneg %p251
        $region58: #{tpu_custom_call.1} parent=55 // pred_check_branch
          %1614 = sbr.rel (%p1612) target = $region60
        $region59: #{tpu_custom_call.1} parent=55 // pred_region
          %s1615 = smul.u32 2, %s28
          %s1617 = ssub.s32 8192, 8192
          %1618 = vsyncadd %s1608, %s1617
          %s1619 = smul.addr %s27, 64
          %s1620 = sadd.s32 %s1615, %s1619
          %s1621 = smul.addr %s1620, 128
          %s1622 = scalar_lea.hbm %s9, %s1621
          %s1623 = sshll.u32 %s1611, 4
          %s1624 = int_to_ptr.vmem [resolvable:$true] %s1623
          %1629 = dma.vmem_to_hbm [thread:$0]  %s1624, 8192, %s1622, %s1608, 256, 256, 16
        $region60: #{tpu_custom_call.1} parent=55 // pred_fallthru
          _
      $region56: #{tpu_custom_call.1} parent=5 // pred_fallthru
        _
      %p1630 = scmp.le.s32.totalorder 2, %s18
      // Predicated region
      $region61: #{tpu_custom_call.1} parent=5 // pred_check
        %p1631 = pneg %p1630
      $region62: #{tpu_custom_call.1} parent=5 // pred_check_branch
        %1633 = sbr.rel (%p1631) target = $region64
      $region63: #{tpu_custom_call.1} parent=5 // pred_region
        %s1634 = ssub.s32 %s18, 2
        // Predicated region
        $region65: #{tpu_custom_call.1} parent=63 // pred_check
          %p1635 = pneg %p257
        $region66: #{tpu_custom_call.1} parent=63 // pred_check_branch
          %1637 = sbr.rel (%p1635) target = $region68
        $region67: #{tpu_custom_call.1} parent=63 // pred_region
          %s1638 = sand.u32 %s242, 1
          %s1639 = scalar_lea.sflag [#allocation3], %s1638
          %s1640 = sand.u32 %s242, 1
          %s1641 = smul.addr %s1640, 512
          %s1642 = scalar_lea.vmem [#allocation2], %s1641
          %1643 = dma.done %s1639, 8192
        $region68: #{tpu_custom_call.1} parent=63 // pred_fallthru
          _
      $region64: #{tpu_custom_call.1} parent=5 // pred_fallthru
        _
    $region6: #{tpu_custom_call.1} parent=1 // loop_footer
      %s22 = sadd.s32 1, %s18
    $region7: #{tpu_custom_call.1} parent=1 // loop_footer_branch
      %17 = sbr.rel target = $region3
    $region8: #{tpu_custom_call.1} parent=1 // loop_exit
      _
    %1644 = vsyncpa [#allocation3], 1
    %s1645 = scalar_lea.sflag [#allocation3], 1
    %1646 = vsyncpa %s1645, 1

</llo_original>
